<compile_context>
chip_gen: v6e
topology: v6e:2x2x1
jax: 0.10.0
libtpu: 0.0.40
codegen_flags: <defaults>
</compile_context>

<pallas_src>
import functools
import math

import jax
import jax.numpy as jnp
from jax.experimental import pallas as pl
from jax.experimental.pallas import tpu as pltpu


def encoder_layer_kernel(x_ref, mask_ref,
                         wqkv_ref, bqkv_ref, wo_ref, bo_ref,
                         w1_ref, b1_ref, w2_ref, b2_ref, ln_ref,
                         o_ref, *, num_heads, d_k, eps):
    bb, S, D = x_ref.shape
    x = x_ref[...].reshape(bb * S, D)                      # (bb*S, D) f32

    ln = ln_ref[...]                                       # (4, D) f32
    g0, be0, g1, be1 = ln[0:1, :], ln[1:2, :], ln[2:3, :], ln[3:4, :]

    def layernorm(z, g, b):
        mu = jnp.mean(z, axis=-1, keepdims=True)
        zc = z - mu
        var = jnp.mean(zc * zc, axis=-1, keepdims=True)
        return zc * jax.lax.rsqrt(var + eps) * g + b

    # ---- SublayerConnection0: norm -> self-attention (dropout = identity) ----
    xn = layernorm(x, g0, be0)

    # Fused QKV projection (weights pre-transposed, 1/sqrt(d_k) folded into Wq/bq).
    qkv = jnp.dot(xn.astype(jnp.bfloat16), wqkv_ref[...],
                  preferred_element_type=jnp.float32) + bqkv_ref[...]   # (bb*S, 3D) f32
    qkv = qkv.reshape(bb, S, 3 * D)

    mask = mask_ref[...]                                   # (bb, S, S) f32; 0 => masked
    neg = jnp.float32(-1e9)

    ctx_heads = []
    for h in range(num_heads):                             # unrolled; heads are lane slices
        q_h = qkv[:, :, h * d_k:(h + 1) * d_k].astype(jnp.bfloat16)           # (bb,S,dk)
        k_h = qkv[:, :, D + h * d_k:D + (h + 1) * d_k].astype(jnp.bfloat16)   # (bb,S,dk)
        v_h = qkv[:, :, 2 * D + h * d_k:2 * D + (h + 1) * d_k].astype(jnp.bfloat16)

        s_h = jnp.einsum('bqd,bkd->bqk', q_h, k_h,
                         preferred_element_type=jnp.float32)                  # (bb,S,S)
        s_h = jnp.where(mask == 0, neg, s_h)
        m_h = jnp.max(s_h, axis=-1, keepdims=True)
        p_h = jnp.exp(s_h - m_h)
        l_h = jnp.sum(p_h, axis=-1, keepdims=True)
        p_h = p_h * pl.reciprocal(l_h, approx=True)                            # EUP recip
        ctx_heads.append(
            jnp.einsum('bqk,bkd->bqd', p_h.astype(jnp.bfloat16), v_h,
                       preferred_element_type=jnp.float32))                    # (bb,S,dk)

    ctx = jnp.concatenate(ctx_heads, axis=-1).reshape(bb * S, D)               # (bb*S, D)

    attn = jnp.dot(ctx.astype(jnp.bfloat16), wo_ref[...],
                   preferred_element_type=jnp.float32) + bo_ref[...]           # (bb*S, D)
    # dropout(attn) -> identity (eval); toy SublayerConnection has no residual add.

    # ---- SublayerConnection1: norm -> position-wise FFN (dropout = identity) ----
    yn = layernorm(attn, g1, be1)
    h1 = jnp.dot(yn.astype(jnp.bfloat16), w1_ref[...],
                 preferred_element_type=jnp.float32) + b1_ref[...]             # (bb*S, Dff)
    h1 = jnp.maximum(h1, 0.0)
    out = jnp.dot(h1.astype(jnp.bfloat16), w2_ref[...],
                  preferred_element_type=jnp.float32) + b2_ref[...]            # (bb*S, D)

    o_ref[...] = out.reshape(bb, S, D).astype(o_ref.dtype)


def transformer_encoder_layer(x, mask, params, *, num_heads, block_b=None, eps=1e-5):
    """x: (B, S, D) f32, mask: (B, S, S) (0 = masked key). params: PyTorch-layout weights."""
    B, S, D = x.shape
    d_k = D // num_heads
    dff = params['w1'].shape[0]
    scale = 1.0 / math.sqrt(d_k)

    # Host-side layout plumbing (done once, outside the kernel):
    #  - pre-transpose all Linear weights to (in, out) so the kernel does x @ W
    #  - fuse [Wq*scale ; Wk ; Wv] into one (D, 3D) matrix (scale folded into Q)
    #  - cast matmul weights to bf16; biases / LayerNorm params stay f32
    wqkv = jnp.concatenate(
        [params['wq'].T * scale, params['wk'].T, params['wv'].T], axis=1
    ).astype(jnp.bfloat16)                                          # (D, 3D)
    bqkv = jnp.concatenate(
        [params['bq'] * scale, params['bk'], params['bv']]
    ).reshape(1, 3 * D).astype(jnp.float32)                         # (1, 3D)
    wo = params['wo'].T.astype(jnp.bfloat16)                        # (D, D)
    bo = params['bo'].reshape(1, D).astype(jnp.float32)
    w1 = params['w1'].T.astype(jnp.bfloat16)                        # (D, Dff)
    b1 = params['b1'].reshape(1, dff).astype(jnp.float32)
    w2 = params['w2'].T.astype(jnp.bfloat16)                        # (Dff, D)
    b2 = params['b2'].reshape(1, D).astype(jnp.float32)
    ln = jnp.stack([params['g0'], params['be0'],
                    params['g1'], params['be1']]).astype(jnp.float32)   # (4, D)

    if block_b is None:
        # a few batch elements per grid step, but keep >=2 parallel steps when B allows
        # (v7x has 2 TensorCores; on v5e/v6e this is a no-op).
        block_b = max(1, min(B // 2, 8)) if B >= 2 else 1
    assert B % block_b == 0, "B must be divisible by block_b"
    grid = (B // block_b,)

    x_spec = pl.BlockSpec((block_b, S, D), lambda b: (b, 0, 0))
    m_spec = pl.BlockSpec((block_b, S, S), lambda b: (b, 0, 0))

    def const(shape):
        return pl.BlockSpec(shape, lambda b: tuple(0 for _ in shape))

    kernel = functools.partial(encoder_layer_kernel,
                               num_heads=num_heads, d_k=d_k, eps=eps)

    return pl.pallas_call(
        kernel,
        out_shape=jax.ShapeDtypeStruct((B, S, D), x.dtype),
        grid_spec=pltpu.PrefetchScalarGridSpec(
            num_scalar_prefetch=0,
            grid=grid,
            in_specs=[x_spec, m_spec,
                      const((D, 3 * D)), const((1, 3 * D)),
                      const((D, D)), const((1, D)),
                      const((D, dff)), const((1, dff)),
                      const((dff, D)), const((1, D)),
                      const((4, D))],
            out_specs=x_spec,
        ),
        compiler_params=pltpu.CompilerParams(
            dimension_semantics=("parallel",)),
    )(x, mask, wqkv, bqkv, wo, bo, w1, b1, w2, b2, ln)


def reference_encoder_layer(x, mask, params, *, num_heads, eps=1e-5):
    """Plain-JAX f32 reference mirroring the PyTorch forward (eval mode)."""
    B, S, D = x.shape
    d_k = D // num_heads

    def layernorm(z, g, b):
        mu = z.mean(-1, keepdims=True)
        var = ((z - mu) ** 2).mean(-1, keepdims=True)
        return (z - mu) / jnp.sqrt(var + eps) * g + b

    def lin(z, w, b):
        return z @ w.T + b

    xn = layernorm(x, params['g0'], params['be0'])
    q = lin(xn, params['wq'], params['bq']).reshape(B, S, num_heads, d_k).transpose(0, 2, 1, 3)
    k = lin(xn, params['wk'], params['bk']).reshape(B, S, num_heads, d_k).transpose(0, 2, 1, 3)
    v = lin(xn, params['wv'], params['bv']).reshape(B, S, num_heads, d_k).transpose(0, 2, 1, 3)
    scores = jnp.einsum('bhqd,bhkd->bhqk', q, k) / math.sqrt(d_k)
    scores = jnp.where(mask[:, None, :, :] == 0, -1e9, scores)
    p = jax.nn.softmax(scores, axis=-1)
    ctx = jnp.einsum('bhqk,bhkd->bhqd', p, v).transpose(0, 2, 1, 3).reshape(B, S, D)
    attn = lin(ctx, params['wo'], params['bo'])

    yn = layernorm(attn, params['g1'], params['be1'])
    h = jax.nn.relu(lin(yn, params['w1'], params['b1']))
    return lin(h, params['w2'], params['b2'])


if __name__ == "__main__":
    B, S, D, H, DFF = 2, 8, 32, 4, 64     # batch, seq, d_model, heads, ffn hidden

    key = jax.random.PRNGKey(0)
    ks = jax.random.split(key, 20)
    bd = 1.0 / math.sqrt(D)               # PyTorch nn.Linear default init range
    bf = 1.0 / math.sqrt(DFF)

    def u(k, shape, bound):
        return jax.random.uniform(k, shape, jnp.float32, -bound, bound)

    params = {
        'wq': u(ks[0], (D, D), bd), 'bq': u(ks[1], (D,), bd),
        'wk': u(ks[2], (D, D), bd), 'bk': u(ks[3], (D,), bd),
        'wv': u(ks[4], (D, D), bd), 'bv': u(ks[5], (D,), bd),
        'wo': u(ks[6], (D, D), bd), 'bo': u(ks[7], (D,), bd),
        'w1': u(ks[8], (DFF, D), bd), 'b1': u(ks[9], (DFF,), bd),
        'w2': u(ks[10], (D, DFF), bf), 'b2': u(ks[11], (D,), bf),
        'g0': 1.0 + 0.1 * u(ks[12], (D,), 1.0), 'be0': 0.1 * u(ks[13], (D,), 1.0),
        'g1': 1.0 + 0.1 * u(ks[14], (D,), 1.0), 'be1': 0.1 * u(ks[15], (D,), 1.0),
    }

    x = jax.random.normal(ks[16], (B, S, D), jnp.float32)
    # Non-trivial key-padding mask: batch 1 masks its last two key positions.
    key_valid = jnp.concatenate(
        [jnp.ones((1, S), jnp.float32),
         jnp.concatenate([jnp.ones((1, S - 2)), jnp.zeros((1, 2))], axis=1)], axis=0)
    mask = key_valid[:, None, :] * jnp.ones((B, S, S), jnp.float32)   # (B, S, S)

    out = transformer_encoder_layer(x, mask, params, num_heads=H)
    out = jax.block_until_ready(out)

    ref = reference_encoder_layer(x, mask, params, num_heads=H)
    assert out.shape == (B, S, D)
    # bf16 MXU operands + approx reciprocal vs. pure-f32 reference -> loose-ish tolerance.
    assert jnp.allclose(out, ref, atol=2e-2, rtol=2e-2), "mismatch vs reference"

    print("KERNEL_OK")
</pallas_src>

<mosaic_0001>
module attributes {stable_mosaic.version = 11 : i64} {
  func.func @encoder_layer_kernel(%arg0: i32, %arg1: memref<1x8x32xf32, #tpu.memory_space<vmem>>, %arg2: memref<1x8x8xf32, #tpu.memory_space<vmem>>, %arg3: memref<32x96xbf16, #tpu.memory_space<vmem>>, %arg4: memref<1x96xf32, #tpu.memory_space<vmem>>, %arg5: memref<32x32xbf16, #tpu.memory_space<vmem>>, %arg6: memref<1x32xf32, #tpu.memory_space<vmem>>, %arg7: memref<32x64xbf16, #tpu.memory_space<vmem>>, %arg8: memref<1x64xf32, #tpu.memory_space<vmem>>, %arg9: memref<64x32xbf16, #tpu.memory_space<vmem>>, %arg10: memref<1x32xf32, #tpu.memory_space<vmem>>, %arg11: memref<4x32xf32, #tpu.memory_space<vmem>>, %arg12: memref<1x8x32xf32, #tpu.memory_space<vmem>>) attributes {dimension_semantics = [#tpu.dimension_semantics<parallel>], iteration_bounds = array<i64: 2>, scalar_prefetch = 0 : i64, scratch_operands = 0 : i64, tpu.core_type = #tpu.core_type<tc>, window_params = [{transform_indices = @transform_0, window_bounds = array<i64: 1, 8, 32>}, {transform_indices = @transform_1, window_bounds = array<i64: 1, 8, 8>}, {pipeline_mode = #tpu.pipeline_mode<synchronous>, transform_indices = @transform_2, window_bounds = array<i64: 32, 96>}, {pipeline_mode = #tpu.pipeline_mode<synchronous>, transform_indices = @transform_3, window_bounds = array<i64: 1, 96>}, {pipeline_mode = #tpu.pipeline_mode<synchronous>, transform_indices = @transform_4, window_bounds = array<i64: 32, 32>}, {pipeline_mode = #tpu.pipeline_mode<synchronous>, transform_indices = @transform_5, window_bounds = array<i64: 1, 32>}, {pipeline_mode = #tpu.pipeline_mode<synchronous>, transform_indices = @transform_6, window_bounds = array<i64: 32, 64>}, {pipeline_mode = #tpu.pipeline_mode<synchronous>, transform_indices = @transform_7, window_bounds = array<i64: 1, 64>}, {pipeline_mode = #tpu.pipeline_mode<synchronous>, transform_indices = @transform_8, window_bounds = array<i64: 64, 32>}, {pipeline_mode = #tpu.pipeline_mode<synchronous>, transform_indices = @transform_9, window_bounds = array<i64: 1, 32>}, {pipeline_mode = #tpu.pipeline_mode<synchronous>, transform_indices = @transform_10, window_bounds = array<i64: 4, 32>}, {transform_indices = @transform_11, window_bounds = array<i64: 1, 8, 32>}]} {
    %c0 = arith.constant 0 : index
    %c0_0 = arith.constant 0 : index
    %c0_1 = arith.constant 0 : index
    %0 = vector.load %arg1[%c0, %c0_0, %c0_1] : memref<1x8x32xf32, #tpu.memory_space<vmem>>, vector<1x8x32xf32>
    %1 = vector.shape_cast %0 : vector<1x8x32xf32> to vector<8x32xf32>
    %c0_2 = arith.constant 0 : index
    %c0_3 = arith.constant 0 : index
    %2 = vector.load %arg11[%c0_2, %c0_3] : memref<4x32xf32, #tpu.memory_space<vmem>>, vector<4x32xf32>
    %3 = vector.extract_strided_slice %2 {offsets = [0, 0], sizes = [1, 32], strides = [1, 1]} : vector<4x32xf32> to vector<1x32xf32>
    %4 = vector.extract_strided_slice %2 {offsets = [1, 0], sizes = [1, 32], strides = [1, 1]} : vector<4x32xf32> to vector<1x32xf32>
    %5 = vector.extract_strided_slice %2 {offsets = [2, 0], sizes = [1, 32], strides = [1, 1]} : vector<4x32xf32> to vector<1x32xf32>
    %6 = vector.extract_strided_slice %2 {offsets = [3, 0], sizes = [1, 32], strides = [1, 1]} : vector<4x32xf32> to vector<1x32xf32>
    %cst = arith.constant dense<0.000000e+00> : vector<8xf32>
    %7 = vector.multi_reduction <add>, %1, %cst [1] : vector<8x32xf32> to vector<8xf32>
    %8 = vector.shape_cast %7 : vector<8xf32> to vector<8x1xf32>
    %cst_4 = arith.constant 3.200000e+01 : f32
    %9 = vector.broadcast %cst_4 : f32 to vector<8x1xf32>
    %10 = arith.divf %8, %9 : vector<8x1xf32>
    %11 = vector.broadcast %10 : vector<8x1xf32> to vector<8x32xf32>
    %12 = arith.subf %1, %11 : vector<8x32xf32>
    %13 = arith.mulf %12, %12 : vector<8x32xf32>
    %cst_5 = arith.constant dense<0.000000e+00> : vector<8xf32>
    %14 = vector.multi_reduction <add>, %13, %cst_5 [1] : vector<8x32xf32> to vector<8xf32>
    %15 = vector.shape_cast %14 : vector<8xf32> to vector<8x1xf32>
    %cst_6 = arith.constant 3.200000e+01 : f32
    %16 = vector.broadcast %cst_6 : f32 to vector<8x1xf32>
    %17 = arith.divf %15, %16 : vector<8x1xf32>
    %cst_7 = arith.constant 9.99999974E-6 : f32
    %18 = vector.broadcast %cst_7 : f32 to vector<8x1xf32>
    %19 = arith.addf %17, %18 : vector<8x1xf32>
    %20 = math.rsqrt %19 : vector<8x1xf32>
    %21 = vector.broadcast %20 : vector<8x1xf32> to vector<8x32xf32>
    %22 = arith.mulf %12, %21 : vector<8x32xf32>
    %23 = vector.broadcast %3 : vector<1x32xf32> to vector<8x32xf32>
    %24 = arith.mulf %22, %23 : vector<8x32xf32>
    %25 = vector.broadcast %4 : vector<1x32xf32> to vector<8x32xf32>
    %26 = arith.addf %24, %25 : vector<8x32xf32>
    %27 = arith.truncf %26 : vector<8x32xf32> to vector<8x32xbf16>
    %c0_8 = arith.constant 0 : index
    %c0_9 = arith.constant 0 : index
    %28 = vector.load %arg3[%c0_8, %c0_9] : memref<32x96xbf16, #tpu.memory_space<vmem>>, vector<32x96xbf16>
    %cst_10 = arith.constant dense<0.000000e+00> : vector<8x96xf32>
    %29 = tpu.matmul %27, %28, %cst_10 {dimension_numbers = #tpu.dot_dimension_numbers<[1], [0], [0], [1], [0, 0, 1, 1], [], []>} : vector<8x32xbf16>, vector<32x96xbf16>, vector<8x96xf32> -> vector<8x96xf32>
    %c0_11 = arith.constant 0 : index
    %c0_12 = arith.constant 0 : index
    %30 = vector.load %arg4[%c0_11, %c0_12] : memref<1x96xf32, #tpu.memory_space<vmem>>, vector<1x96xf32>
    %31 = vector.broadcast %30 : vector<1x96xf32> to vector<8x96xf32>
    %32 = arith.addf %29, %31 : vector<8x96xf32>
    %33 = vector.shape_cast %32 : vector<8x96xf32> to vector<1x8x96xf32>
    %c0_13 = arith.constant 0 : index
    %c0_14 = arith.constant 0 : index
    %c0_15 = arith.constant 0 : index
    %34 = vector.load %arg2[%c0_13, %c0_14, %c0_15] : memref<1x8x8xf32, #tpu.memory_space<vmem>>, vector<1x8x8xf32>
    %35 = vector.extract_strided_slice %33 {offsets = [0, 0, 0], sizes = [1, 8, 8], strides = [1, 1, 1]} : vector<1x8x96xf32> to vector<1x8x8xf32>
    %36 = arith.truncf %35 : vector<1x8x8xf32> to vector<1x8x8xbf16>
    %37 = vector.extract_strided_slice %33 {offsets = [0, 0, 32], sizes = [1, 8, 8], strides = [1, 1, 1]} : vector<1x8x96xf32> to vector<1x8x8xf32>
    %38 = arith.truncf %37 : vector<1x8x8xf32> to vector<1x8x8xbf16>
    %39 = vector.extract_strided_slice %33 {offsets = [0, 0, 64], sizes = [1, 8, 8], strides = [1, 1, 1]} : vector<1x8x96xf32> to vector<1x8x8xf32>
    %40 = arith.truncf %39 : vector<1x8x8xf32> to vector<1x8x8xbf16>
    "tpu.trace_start"() <{level = 10 : i32, message = "bqd,bkd->bqk"}> : () -> ()
    %cst_16 = arith.constant dense<0.000000e+00> : vector<1x8x8xf32>
    %41 = tpu.matmul %36, %38, %cst_16 {dimension_numbers = #tpu.dot_dimension_numbers<[2], [2], [1], [1], [0, 0, 0, 1, 1, 1], [0], [0]>} : vector<1x8x8xbf16>, vector<1x8x8xbf16>, vector<1x8x8xf32> -> vector<1x8x8xf32>
    %cst_17 = arith.constant 0.000000e+00 : f32
    "tpu.trace_stop"() : () -> ()
    %42 = vector.broadcast %cst_17 : f32 to vector<1x8x8xf32>
    %43 = arith.cmpf oeq, %34, %42 : vector<1x8x8xf32>
    %cst_18 = arith.constant -1.000000e+09 : f32
    %44 = vector.broadcast %cst_18 : f32 to vector<1x8x8xf32>
    %45 = arith.select %43, %44, %41 : vector<1x8x8xi1>, vector<1x8x8xf32>
    %cst_19 = arith.constant dense<0xFF800000> : vector<1x8xf32>
    %46 = vector.multi_reduction <maximumf>, %45, %cst_19 [2] : vector<1x8x8xf32> to vector<1x8xf32>
    %47 = vector.shape_cast %46 : vector<1x8xf32> to vector<1x8x1xf32>
    %48 = vector.broadcast %47 : vector<1x8x1xf32> to vector<1x8x8xf32>
    %49 = arith.subf %45, %48 : vector<1x8x8xf32>
    %50 = math.exp %49 : vector<1x8x8xf32>
    %cst_20 = arith.constant dense<0.000000e+00> : vector<1x8xf32>
    %51 = vector.multi_reduction <add>, %50, %cst_20 [2] : vector<1x8x8xf32> to vector<1x8xf32>
    %52 = vector.shape_cast %51 : vector<1x8xf32> to vector<1x8x1xf32>
    %53 = tpu.reciprocal %52 {approx = true} : vector<1x8x1xf32> -> vector<1x8x1xf32>
    %54 = vector.broadcast %53 : vector<1x8x1xf32> to vector<1x8x8xf32>
    %55 = arith.mulf %50, %54 : vector<1x8x8xf32>
    %56 = arith.truncf %55 : vector<1x8x8xf32> to vector<1x8x8xbf16>
    "tpu.trace_start"() <{level = 10 : i32, message = "bqk,bkd->bqd"}> : () -> ()
    %cst_21 = arith.constant dense<0.000000e+00> : vector<1x8x8xf32>
    %57 = tpu.matmul %56, %40, %cst_21 {dimension_numbers = #tpu.dot_dimension_numbers<[2], [1], [1], [2], [0, 0, 0, 1, 1, 2], [0], [0]>} : vector<1x8x8xbf16>, vector<1x8x8xbf16>, vector<1x8x8xf32> -> vector<1x8x8xf32>
    "tpu.trace_stop"() : () -> ()
    %58 = vector.extract_strided_slice %33 {offsets = [0, 0, 8], sizes = [1, 8, 8], strides = [1, 1, 1]} : vector<1x8x96xf32> to vector<1x8x8xf32>
    %59 = arith.truncf %58 : vector<1x8x8xf32> to vector<1x8x8xbf16>
    %60 = vector.extract_strided_slice %33 {offsets = [0, 0, 40], sizes = [1, 8, 8], strides = [1, 1, 1]} : vector<1x8x96xf32> to vector<1x8x8xf32>
    %61 = arith.truncf %60 : vector<1x8x8xf32> to vector<1x8x8xbf16>
    %62 = vector.extract_strided_slice %33 {offsets = [0, 0, 72], sizes = [1, 8, 8], strides = [1, 1, 1]} : vector<1x8x96xf32> to vector<1x8x8xf32>
    %63 = arith.truncf %62 : vector<1x8x8xf32> to vector<1x8x8xbf16>
    "tpu.trace_start"() <{level = 10 : i32, message = "bqd,bkd->bqk"}> : () -> ()
    %cst_22 = arith.constant dense<0.000000e+00> : vector<1x8x8xf32>
    %64 = tpu.matmul %59, %61, %cst_22 {dimension_numbers = #tpu.dot_dimension_numbers<[2], [2], [1], [1], [0, 0, 0, 1, 1, 1], [0], [0]>} : vector<1x8x8xbf16>, vector<1x8x8xbf16>, vector<1x8x8xf32> -> vector<1x8x8xf32>
    %cst_23 = arith.constant 0.000000e+00 : f32
    "tpu.trace_stop"() : () -> ()
    %65 = vector.broadcast %cst_23 : f32 to vector<1x8x8xf32>
    %66 = arith.cmpf oeq, %34, %65 : vector<1x8x8xf32>
    %cst_24 = arith.constant -1.000000e+09 : f32
    %67 = vector.broadcast %cst_24 : f32 to vector<1x8x8xf32>
    %68 = arith.select %66, %67, %64 : vector<1x8x8xi1>, vector<1x8x8xf32>
    %cst_25 = arith.constant dense<0xFF800000> : vector<1x8xf32>
    %69 = vector.multi_reduction <maximumf>, %68, %cst_25 [2] : vector<1x8x8xf32> to vector<1x8xf32>
    %70 = vector.shape_cast %69 : vector<1x8xf32> to vector<1x8x1xf32>
    %71 = vector.broadcast %70 : vector<1x8x1xf32> to vector<1x8x8xf32>
    %72 = arith.subf %68, %71 : vector<1x8x8xf32>
    %73 = math.exp %72 : vector<1x8x8xf32>
    %cst_26 = arith.constant dense<0.000000e+00> : vector<1x8xf32>
    %74 = vector.multi_reduction <add>, %73, %cst_26 [2] : vector<1x8x8xf32> to vector<1x8xf32>
    %75 = vector.shape_cast %74 : vector<1x8xf32> to vector<1x8x1xf32>
    %76 = tpu.reciprocal %75 {approx = true} : vector<1x8x1xf32> -> vector<1x8x1xf32>
    %77 = vector.broadcast %76 : vector<1x8x1xf32> to vector<1x8x8xf32>
    %78 = arith.mulf %73, %77 : vector<1x8x8xf32>
    %79 = arith.truncf %78 : vector<1x8x8xf32> to vector<1x8x8xbf16>
    "tpu.trace_start"() <{level = 10 : i32, message = "bqk,bkd->bqd"}> : () -> ()
    %cst_27 = arith.constant dense<0.000000e+00> : vector<1x8x8xf32>
    %80 = tpu.matmul %79, %63, %cst_27 {dimension_numbers = #tpu.dot_dimension_numbers<[2], [1], [1], [2], [0, 0, 0, 1, 1, 2], [0], [0]>} : vector<1x8x8xbf16>, vector<1x8x8xbf16>, vector<1x8x8xf32> -> vector<1x8x8xf32>
    "tpu.trace_stop"() : () -> ()
    %81 = vector.extract_strided_slice %33 {offsets = [0, 0, 16], sizes = [1, 8, 8], strides = [1, 1, 1]} : vector<1x8x96xf32> to vector<1x8x8xf32>
    %82 = arith.truncf %81 : vector<1x8x8xf32> to vector<1x8x8xbf16>
    %83 = vector.extract_strided_slice %33 {offsets = [0, 0, 48], sizes = [1, 8, 8], strides = [1, 1, 1]} : vector<1x8x96xf32> to vector<1x8x8xf32>
    %84 = arith.truncf %83 : vector<1x8x8xf32> to vector<1x8x8xbf16>
    %85 = vector.extract_strided_slice %33 {offsets = [0, 0, 80], sizes = [1, 8, 8], strides = [1, 1, 1]} : vector<1x8x96xf32> to vector<1x8x8xf32>
    %86 = arith.truncf %85 : vector<1x8x8xf32> to vector<1x8x8xbf16>
    "tpu.trace_start"() <{level = 10 : i32, message = "bqd,bkd->bqk"}> : () -> ()
    %cst_28 = arith.constant dense<0.000000e+00> : vector<1x8x8xf32>
    %87 = tpu.matmul %82, %84, %cst_28 {dimension_numbers = #tpu.dot_dimension_numbers<[2], [2], [1], [1], [0, 0, 0, 1, 1, 1], [0], [0]>} : vector<1x8x8xbf16>, vector<1x8x8xbf16>, vector<1x8x8xf32> -> vector<1x8x8xf32>
    %cst_29 = arith.constant 0.000000e+00 : f32
    "tpu.trace_stop"() : () -> ()
    %88 = vector.broadcast %cst_29 : f32 to vector<1x8x8xf32>
    %89 = arith.cmpf oeq, %34, %88 : vector<1x8x8xf32>
    %cst_30 = arith.constant -1.000000e+09 : f32
    %90 = vector.broadcast %cst_30 : f32 to vector<1x8x8xf32>
    %91 = arith.select %89, %90, %87 : vector<1x8x8xi1>, vector<1x8x8xf32>
    %cst_31 = arith.constant dense<0xFF800000> : vector<1x8xf32>
    %92 = vector.multi_reduction <maximumf>, %91, %cst_31 [2] : vector<1x8x8xf32> to vector<1x8xf32>
    %93 = vector.shape_cast %92 : vector<1x8xf32> to vector<1x8x1xf32>
    %94 = vector.broadcast %93 : vector<1x8x1xf32> to vector<1x8x8xf32>
    %95 = arith.subf %91, %94 : vector<1x8x8xf32>
    %96 = math.exp %95 : vector<1x8x8xf32>
    %cst_32 = arith.constant dense<0.000000e+00> : vector<1x8xf32>
    %97 = vector.multi_reduction <add>, %96, %cst_32 [2] : vector<1x8x8xf32> to vector<1x8xf32>
    %98 = vector.shape_cast %97 : vector<1x8xf32> to vector<1x8x1xf32>
    %99 = tpu.reciprocal %98 {approx = true} : vector<1x8x1xf32> -> vector<1x8x1xf32>
    %100 = vector.broadcast %99 : vector<1x8x1xf32> to vector<1x8x8xf32>
    %101 = arith.mulf %96, %100 : vector<1x8x8xf32>
    %102 = arith.truncf %101 : vector<1x8x8xf32> to vector<1x8x8xbf16>
    "tpu.trace_start"() <{level = 10 : i32, message = "bqk,bkd->bqd"}> : () -> ()
    %cst_33 = arith.constant dense<0.000000e+00> : vector<1x8x8xf32>
    %103 = tpu.matmul %102, %86, %cst_33 {dimension_numbers = #tpu.dot_dimension_numbers<[2], [1], [1], [2], [0, 0, 0, 1, 1, 2], [0], [0]>} : vector<1x8x8xbf16>, vector<1x8x8xbf16>, vector<1x8x8xf32> -> vector<1x8x8xf32>
    "tpu.trace_stop"() : () -> ()
    %104 = vector.extract_strided_slice %33 {offsets = [0, 0, 24], sizes = [1, 8, 8], strides = [1, 1, 1]} : vector<1x8x96xf32> to vector<1x8x8xf32>
    %105 = arith.truncf %104 : vector<1x8x8xf32> to vector<1x8x8xbf16>
    %106 = vector.extract_strided_slice %33 {offsets = [0, 0, 56], sizes = [1, 8, 8], strides = [1, 1, 1]} : vector<1x8x96xf32> to vector<1x8x8xf32>
    %107 = arith.truncf %106 : vector<1x8x8xf32> to vector<1x8x8xbf16>
    %108 = vector.extract_strided_slice %33 {offsets = [0, 0, 88], sizes = [1, 8, 8], strides = [1, 1, 1]} : vector<1x8x96xf32> to vector<1x8x8xf32>
    %109 = arith.truncf %108 : vector<1x8x8xf32> to vector<1x8x8xbf16>
    "tpu.trace_start"() <{level = 10 : i32, message = "bqd,bkd->bqk"}> : () -> ()
    %cst_34 = arith.constant dense<0.000000e+00> : vector<1x8x8xf32>
    %110 = tpu.matmul %105, %107, %cst_34 {dimension_numbers = #tpu.dot_dimension_numbers<[2], [2], [1], [1], [0, 0, 0, 1, 1, 1], [0], [0]>} : vector<1x8x8xbf16>, vector<1x8x8xbf16>, vector<1x8x8xf32> -> vector<1x8x8xf32>
    %cst_35 = arith.constant 0.000000e+00 : f32
    "tpu.trace_stop"() : () -> ()
    %111 = vector.broadcast %cst_35 : f32 to vector<1x8x8xf32>
    %112 = arith.cmpf oeq, %34, %111 : vector<1x8x8xf32>
    %cst_36 = arith.constant -1.000000e+09 : f32
    %113 = vector.broadcast %cst_36 : f32 to vector<1x8x8xf32>
    %114 = arith.select %112, %113, %110 : vector<1x8x8xi1>, vector<1x8x8xf32>
    %cst_37 = arith.constant dense<0xFF800000> : vector<1x8xf32>
    %115 = vector.multi_reduction <maximumf>, %114, %cst_37 [2] : vector<1x8x8xf32> to vector<1x8xf32>
    %116 = vector.shape_cast %115 : vector<1x8xf32> to vector<1x8x1xf32>
    %117 = vector.broadcast %116 : vector<1x8x1xf32> to vector<1x8x8xf32>
    %118 = arith.subf %114, %117 : vector<1x8x8xf32>
    %119 = math.exp %118 : vector<1x8x8xf32>
    %cst_38 = arith.constant dense<0.000000e+00> : vector<1x8xf32>
    %120 = vector.multi_reduction <add>, %119, %cst_38 [2] : vector<1x8x8xf32> to vector<1x8xf32>
    %121 = vector.shape_cast %120 : vector<1x8xf32> to vector<1x8x1xf32>
    %122 = tpu.reciprocal %121 {approx = true} : vector<1x8x1xf32> -> vector<1x8x1xf32>
    %123 = vector.broadcast %122 : vector<1x8x1xf32> to vector<1x8x8xf32>
    %124 = arith.mulf %119, %123 : vector<1x8x8xf32>
    %125 = arith.truncf %124 : vector<1x8x8xf32> to vector<1x8x8xbf16>
    "tpu.trace_start"() <{level = 10 : i32, message = "bqk,bkd->bqd"}> : () -> ()
    %cst_39 = arith.constant dense<0.000000e+00> : vector<1x8x8xf32>
    %126 = tpu.matmul %125, %109, %cst_39 {dimension_numbers = #tpu.dot_dimension_numbers<[2], [1], [1], [2], [0, 0, 0, 1, 1, 2], [0], [0]>} : vector<1x8x8xbf16>, vector<1x8x8xbf16>, vector<1x8x8xf32> -> vector<1x8x8xf32>
    "tpu.trace_stop"() : () -> ()
    %127 = tpu.concatenate %57, %80, %103, %126 in 2 : vector<1x8x8xf32>, vector<1x8x8xf32>, vector<1x8x8xf32>, vector<1x8x8xf32> -> vector<1x8x32xf32>
    %128 = vector.shape_cast %127 : vector<1x8x32xf32> to vector<8x32xf32>
    %129 = arith.truncf %128 : vector<8x32xf32> to vector<8x32xbf16>
    %c0_40 = arith.constant 0 : index
    %c0_41 = arith.constant 0 : index
    %130 = vector.load %arg5[%c0_40, %c0_41] : memref<32x32xbf16, #tpu.memory_space<vmem>>, vector<32x32xbf16>
    %cst_42 = arith.constant dense<0.000000e+00> : vector<8x32xf32>
    %131 = tpu.matmul %129, %130, %cst_42 {dimension_numbers = #tpu.dot_dimension_numbers<[1], [0], [0], [1], [0, 0, 1, 1], [], []>} : vector<8x32xbf16>, vector<32x32xbf16>, vector<8x32xf32> -> vector<8x32xf32>
    %c0_43 = arith.constant 0 : index
    %c0_44 = arith.constant 0 : index
    %132 = vector.load %arg6[%c0_43, %c0_44] : memref<1x32xf32, #tpu.memory_space<vmem>>, vector<1x32xf32>
    %133 = vector.broadcast %132 : vector<1x32xf32> to vector<8x32xf32>
    %134 = arith.addf %131, %133 : vector<8x32xf32>
    %cst_45 = arith.constant dense<0.000000e+00> : vector<8xf32>
    %135 = vector.multi_reduction <add>, %134, %cst_45 [1] : vector<8x32xf32> to vector<8xf32>
    %136 = vector.shape_cast %135 : vector<8xf32> to vector<8x1xf32>
    %cst_46 = arith.constant 3.200000e+01 : f32
    %137 = vector.broadcast %cst_46 : f32 to vector<8x1xf32>
    %138 = arith.divf %136, %137 : vector<8x1xf32>
    %139 = vector.broadcast %138 : vector<8x1xf32> to vector<8x32xf32>
    %140 = arith.subf %134, %139 : vector<8x32xf32>
    %141 = arith.mulf %140, %140 : vector<8x32xf32>
    %cst_47 = arith.constant dense<0.000000e+00> : vector<8xf32>
    %142 = vector.multi_reduction <add>, %141, %cst_47 [1] : vector<8x32xf32> to vector<8xf32>
    %143 = vector.shape_cast %142 : vector<8xf32> to vector<8x1xf32>
    %cst_48 = arith.constant 3.200000e+01 : f32
    %144 = vector.broadcast %cst_48 : f32 to vector<8x1xf32>
    %145 = arith.divf %143, %144 : vector<8x1xf32>
    %cst_49 = arith.constant 9.99999974E-6 : f32
    %146 = vector.broadcast %cst_49 : f32 to vector<8x1xf32>
    %147 = arith.addf %145, %146 : vector<8x1xf32>
    %148 = math.rsqrt %147 : vector<8x1xf32>
    %149 = vector.broadcast %148 : vector<8x1xf32> to vector<8x32xf32>
    %150 = arith.mulf %140, %149 : vector<8x32xf32>
    %151 = vector.broadcast %5 : vector<1x32xf32> to vector<8x32xf32>
    %152 = arith.mulf %150, %151 : vector<8x32xf32>
    %153 = vector.broadcast %6 : vector<1x32xf32> to vector<8x32xf32>
    %154 = arith.addf %152, %153 : vector<8x32xf32>
    %155 = arith.truncf %154 : vector<8x32xf32> to vector<8x32xbf16>
    %c0_50 = arith.constant 0 : index
    %c0_51 = arith.constant 0 : index
    %156 = vector.load %arg7[%c0_50, %c0_51] : memref<32x64xbf16, #tpu.memory_space<vmem>>, vector<32x64xbf16>
    %cst_52 = arith.constant dense<0.000000e+00> : vector<8x64xf32>
    %157 = tpu.matmul %155, %156, %cst_52 {dimension_numbers = #tpu.dot_dimension_numbers<[1], [0], [0], [1], [0, 0, 1, 1], [], []>} : vector<8x32xbf16>, vector<32x64xbf16>, vector<8x64xf32> -> vector<8x64xf32>
    %c0_53 = arith.constant 0 : index
    %c0_54 = arith.constant 0 : index
    %158 = vector.load %arg8[%c0_53, %c0_54] : memref<1x64xf32, #tpu.memory_space<vmem>>, vector<1x64xf32>
    %159 = vector.broadcast %158 : vector<1x64xf32> to vector<8x64xf32>
    %160 = arith.addf %157, %159 : vector<8x64xf32>
    %cst_55 = arith.constant 0.000000e+00 : f32
    %161 = vector.broadcast %cst_55 : f32 to vector<8x64xf32>
    %162 = arith.maximumf %160, %161 : vector<8x64xf32>
    %163 = arith.truncf %162 : vector<8x64xf32> to vector<8x64xbf16>
    %c0_56 = arith.constant 0 : index
    %c0_57 = arith.constant 0 : index
    %164 = vector.load %arg9[%c0_56, %c0_57] : memref<64x32xbf16, #tpu.memory_space<vmem>>, vector<64x32xbf16>
    %cst_58 = arith.constant dense<0.000000e+00> : vector<8x32xf32>
    %165 = tpu.matmul %163, %164, %cst_58 {dimension_numbers = #tpu.dot_dimension_numbers<[1], [0], [0], [1], [0, 0, 1, 1], [], []>} : vector<8x64xbf16>, vector<64x32xbf16>, vector<8x32xf32> -> vector<8x32xf32>
    %c0_59 = arith.constant 0 : index
    %c0_60 = arith.constant 0 : index
    %166 = vector.load %arg10[%c0_59, %c0_60] : memref<1x32xf32, #tpu.memory_space<vmem>>, vector<1x32xf32>
    %167 = vector.broadcast %166 : vector<1x32xf32> to vector<8x32xf32>
    %168 = arith.addf %165, %167 : vector<8x32xf32>
    %169 = vector.shape_cast %168 : vector<8x32xf32> to vector<1x8x32xf32>
    %c0_61 = arith.constant 0 : index
    %c0_62 = arith.constant 0 : index
    %c0_63 = arith.constant 0 : index
    %170 = vector.load %arg12[%c0_61, %c0_62, %c0_63] : memref<1x8x32xf32, #tpu.memory_space<vmem>>, vector<1x8x32xf32>
    tpu.vector_store %arg12[%c0_61, %c0_62, %c0_63], %169 {strides = array<i32>} : memref<1x8x32xf32, #tpu.memory_space<vmem>>, vector<1x8x32xf32>,
    return
  }
  func.func @transform_0(%arg0: i32) -> (i32, i32, i32) {
    %c0_i32 = arith.constant 0 : i32
    %c0_i32_0 = arith.constant 0 : i32
    %c0_i32_1 = arith.constant 0 : i32
    return %arg0, %c0_i32, %c0_i32_0 : i32, i32, i32
  }
  func.func @transform_1(%arg0: i32) -> (i32, i32, i32) {
    %c0_i32 = arith.constant 0 : i32
    %c0_i32_0 = arith.constant 0 : i32
    %c0_i32_1 = arith.constant 0 : i32
    return %arg0, %c0_i32, %c0_i32_0 : i32, i32, i32
  }
  func.func @transform_2(%arg0: i32) -> (i32, i32) {
    %c0_i32 = arith.constant 0 : i32
    %c0_i32_0 = arith.constant 0 : i32
    %c0_i32_1 = arith.constant 0 : i32
    return %c0_i32, %c0_i32_0 : i32, i32
  }
  func.func @transform_3(%arg0: i32) -> (i32, i32) {
    %c0_i32 = arith.constant 0 : i32
    %c0_i32_0 = arith.constant 0 : i32
    %c0_i32_1 = arith.constant 0 : i32
    return %c0_i32, %c0_i32_0 : i32, i32
  }
  func.func @transform_4(%arg0: i32) -> (i32, i32) {
    %c0_i32 = arith.constant 0 : i32
    %c0_i32_0 = arith.constant 0 : i32
    %c0_i32_1 = arith.constant 0 : i32
    return %c0_i32, %c0_i32_0 : i32, i32
  }
  func.func @transform_5(%arg0: i32) -> (i32, i32) {
    %c0_i32 = arith.constant 0 : i32
    %c0_i32_0 = arith.constant 0 : i32
    %c0_i32_1 = arith.constant 0 : i32
    return %c0_i32, %c0_i32_0 : i32, i32
  }
  func.func @transform_6(%arg0: i32) -> (i32, i32) {
    %c0_i32 = arith.constant 0 : i32
    %c0_i32_0 = arith.constant 0 : i32
    %c0_i32_1 = arith.constant 0 : i32
    return %c0_i32, %c0_i32_0 : i32, i32
  }
  func.func @transform_7(%arg0: i32) -> (i32, i32) {
    %c0_i32 = arith.constant 0 : i32
    %c0_i32_0 = arith.constant 0 : i32
    %c0_i32_1 = arith.constant 0 : i32
    return %c0_i32, %c0_i32_0 : i32, i32
  }
  func.func @transform_8(%arg0: i32) -> (i32, i32) {
    %c0_i32 = arith.constant 0 : i32
    %c0_i32_0 = arith.constant 0 : i32
    %c0_i32_1 = arith.constant 0 : i32
    return %c0_i32, %c0_i32_0 : i32, i32
  }
  func.func @transform_9(%arg0: i32) -> (i32, i32) {
    %c0_i32 = arith.constant 0 : i32
    %c0_i32_0 = arith.constant 0 : i32
    %c0_i32_1 = arith.constant 0 : i32
    return %c0_i32, %c0_i32_0 : i32, i32
  }
  func.func @transform_10(%arg0: i32) -> (i32, i32) {
    %c0_i32 = arith.constant 0 : i32
    %c0_i32_0 = arith.constant 0 : i32
    %c0_i32_1 = arith.constant 0 : i32
    return %c0_i32, %c0_i32_0 : i32, i32
  }
  func.func @transform_11(%arg0: i32) -> (i32, i32, i32) {
    %c0_i32 = arith.constant 0 : i32
    %c0_i32_0 = arith.constant 0 : i32
    %c0_i32_1 = arith.constant 0 : i32
    return %arg0, %c0_i32, %c0_i32_0 : i32, i32, i32
  }
}

</mosaic_0001>

<llo_original>
// kernel: tpu_custom_call.1
$region0: #{tpu_custom_call.1}
  #allocation0 [shape = 'u32[]', space=smem, size = 0x4, offset = 0x4, fixed_abs, tag = 'smem constant byte address 0x4 - core index']
  #allocation1 [shape = 'u32[144,128]{1,0:T(1,128)}', space=vmem, size = 0x12000, scoped, tag = 'internal scratch']
  %s0 = inlined_call_operand.vmem [shape: f32[2,8,32], index: 0, kind: input, shape index: {}]
  %s1 = inlined_call_operand.vmem [shape: f32[2,8,8], index: 1, kind: input, shape index: {}]
  %s2 = inlined_call_operand.vmem [shape: bf16[32,96], index: 2, kind: input, shape index: {}]
  %s3 = inlined_call_operand.vmem [shape: f32[1,96], index: 3, kind: input, shape index: {}]
  %s4 = inlined_call_operand.hbm [shape: bf16[32,32], index: 4, kind: input, shape index: {}]
  %s5 = inlined_call_operand.vmem [shape: f32[1,32], index: 5, kind: input, shape index: {}]
  %s6 = inlined_call_operand.hbm [shape: bf16[32,64], index: 6, kind: input, shape index: {}]
  %s7 = inlined_call_operand.vmem [shape: f32[1,64], index: 7, kind: input, shape index: {}]
  %s8 = inlined_call_operand.vmem [shape: bf16[64,32], index: 8, kind: input, shape index: {}]
  %s9 = inlined_call_operand.vmem [shape: f32[1,32], index: 9, kind: input, shape index: {}]
  %s10 = inlined_call_operand.vmem [shape: f32[4,32], index: 10, kind: input, shape index: {}]
  %s11 = inlined_call_operand.hbm [shape: f32[2,8,32], index: 11, kind: output, shape index: {}]
  %s12 = sld [smem:[#allocation0]]
  $region85: #{tpu_custom_call.1} parent=0
    _
  %s14 = ssub.s32 1, %s12
  %s15 = scalar_select 0, %s14, %s12
  $region1: #{tpu_custom_call.1} parent=0
    #allocation2 [shape = 'u8[8192]{0}', space=vmem, size = 0x2000, scoped, tag = 'input window, operand 4, single buffered']
    #allocation3 [shape = 's32[2]{0}', space=sflag, size = 0x8, scoped, tag = 'scoped memory for tpu_custom_call.1']
    #allocation4 [shape = 's32[2]{0}', space=sflag, size = 0x8, scoped, tag = 'scoped memory for tpu_custom_call.1']
    #allocation5 [shape = 'u8[8192]{0}', space=vmem, size = 0x2000, scoped, tag = 'input window, operand 6, single buffered']
    #allocation6 [shape = 's32[1]{0}', space=sflag, size = 0x4, scoped, tag = 'scoped memory for tpu_custom_call.1']
    #allocation7 [shape = 'u8[8192]{0}', space=vmem, size = 0x2000, scoped, tag = 'output window, operand 0']
    %16 = vsyncpa [#allocation3], 0
    %17 = vsyncpa [#allocation6], 0
    %18 = vsyncpa [#allocation4], 0
    %s19 = scalar_lea.sflag [#allocation4], 1
    %20 = vsyncpa %s19, 0
    loop: start=0, step=1, limit=4
    $region2: #{tpu_custom_call.1} parent=1 // loop_pre_header
      _
    $region3: #{tpu_custom_call.1} parent=1 // loop_header
      %s22 = sphi 0, %s26
      %p23 = scmp.ge.s32.totalorder %s22, 4
      %s32 = sphi 0, %s34
      %s35 = sphi 0, %s32
      %s36 = sphi 0, %s35
      %s52 = sphi 0, %s36
      %s58 = sphi 0, %s60
      %s61 = sphi 0, %s58
      %s62 = sphi 0, %s61
      %s78 = sphi 0, %s62
      %s82 = sphi 0, %s82
      %s84 = sphi 0, %s82
      %s85 = sphi 0, %s84
      %s99 = sphi 0, %s85
      %s103 = sphi 0, %s103
      %s105 = sphi 0, %s103
      %s106 = sphi 0, %s105
      %s120 = sphi 0, %s106
      %s124 = sphi 0, %s124
      %s126 = sphi 0, %s124
      %s127 = sphi 0, %s126
      %s141 = sphi 0, %s127
      %s145 = sphi 0, %s145
      %s147 = sphi 0, %s145
      %s148 = sphi 0, %s147
      %s162 = sphi 0, %s148
      %s166 = sphi 0, %s166
      %s168 = sphi 0, %s166
      %s169 = sphi 0, %s168
      %s183 = sphi 0, %s169
      %s187 = sphi 0, %s187
      %s189 = sphi 0, %s187
      %s190 = sphi 0, %s189
      %s204 = sphi 0, %s190
      %s208 = sphi 0, %s208
      %s210 = sphi 0, %s208
      %s211 = sphi 0, %s210
      %s225 = sphi 0, %s211
      %s229 = sphi 0, %s229
      %s231 = sphi 0, %s229
      %s232 = sphi 0, %s231
      %s246 = sphi 0, %s232
      %s250 = sphi 0, %s250
      %s252 = sphi 0, %s250
      %s253 = sphi 0, %s252
      %s267 = sphi 0, %s253
      %s273 = sphi 0, %s275
      %s276 = sphi 0, %s273
      %s277 = sphi 0, %s276
      %s293 = sphi 0, %s277
    $region4: #{tpu_custom_call.1} parent=1 // loop_header_branch
      %25 = sbr.rel (%p23) target = $region8
    $region5: #{tpu_custom_call.1} parent=1 // loop_body
      %s27 = ssub.s32 %s22, 1
      %s28 = ssub.s32 %s22, 2
      %s29 = sadd.s32 %s22, 1
      %s30 = ssub.s32 %s22, %s29
      %p31 = scmp.eq.s32.totalorder %s30, 0
      %s33 = sadd.s32 %s32, 1
      %s34 = scalar_select %p31, %s32, %s33
      %p37 = pneg %p31
      %p38 = scmp.eq.s32.totalorder %s22, 1
      %p39 = por %p37, %p38
      %p40 = scmp.ne.s32.totalorder %s32, %s35
      %p41 = scmp.eq.s32.totalorder %s22, 0
      %p42 = por %p40, %p41
      %p43 = scmp.ne.s32.totalorder %s32, %s35
      %p44 = scmp.eq.s32.totalorder %s27, 1
      %p45 = por %p43, %p44
      %p46 = scmp.ne.s32.totalorder %s35, %s36
      %p47 = scmp.eq.s32.totalorder %s27, 0
      %p48 = por %p46, %p47
      %p49 = scmp.ne.s32.totalorder %s35, %s36
      %p50 = scmp.eq.s32.totalorder %s28, 1
      %p51 = por %p49, %p50
      %p53 = scmp.ne.s32.totalorder %s36, %s52
      %p54 = scmp.eq.s32.totalorder %s28, 0
      %p55 = por %p53, %p54
      %s56 = ssub.s32 %s22, %s29
      %p57 = scmp.eq.s32.totalorder %s56, 0
      %s59 = sadd.s32 %s58, 1
      %s60 = scalar_select %p57, %s58, %s59
      %p63 = pneg %p57
      %p64 = scmp.eq.s32.totalorder %s22, 1
      %p65 = por %p63, %p64
      %p66 = scmp.ne.s32.totalorder %s58, %s61
      %p67 = scmp.eq.s32.totalorder %s22, 0
      %p68 = por %p66, %p67
      %p69 = scmp.ne.s32.totalorder %s58, %s61
      %p70 = scmp.eq.s32.totalorder %s27, 1
      %p71 = por %p69, %p70
      %p72 = scmp.ne.s32.totalorder %s61, %s62
      %p73 = scmp.eq.s32.totalorder %s27, 0
      %p74 = por %p72, %p73
      %p75 = scmp.ne.s32.totalorder %s61, %s62
      %p76 = scmp.eq.s32.totalorder %s28, 1
      %p77 = por %p75, %p76
      %p79 = scmp.ne.s32.totalorder %s62, %s78
      %p80 = scmp.eq.s32.totalorder %s28, 0
      %p81 = por %p79, %p80
      %s83 = sadd.s32 %s82, 1
      %p86 = scmp.eq.s32.totalorder %s22, 1
      %p87 = scmp.ne.s32.totalorder %s82, %s84
      %p88 = scmp.eq.s32.totalorder %s22, 0
      %p89 = por %p87, %p88
      %p90 = scmp.ne.s32.totalorder %s82, %s84
      %p91 = scmp.eq.s32.totalorder %s27, 1
      %p92 = por %p90, %p91
      %p93 = scmp.ne.s32.totalorder %s84, %s85
      %p94 = scmp.eq.s32.totalorder %s27, 0
      %p95 = por %p93, %p94
      %p96 = scmp.ne.s32.totalorder %s84, %s85
      %p97 = scmp.eq.s32.totalorder %s28, 1
      %p98 = por %p96, %p97
      %p100 = scmp.ne.s32.totalorder %s85, %s99
      %p101 = scmp.eq.s32.totalorder %s28, 0
      %p102 = por %p100, %p101
      %s104 = sadd.s32 %s103, 1
      %p107 = scmp.eq.s32.totalorder %s22, 1
      %p108 = scmp.ne.s32.totalorder %s103, %s105
      %p109 = scmp.eq.s32.totalorder %s22, 0
      %p110 = por %p108, %p109
      %p111 = scmp.ne.s32.totalorder %s103, %s105
      %p112 = scmp.eq.s32.totalorder %s27, 1
      %p113 = por %p111, %p112
      %p114 = scmp.ne.s32.totalorder %s105, %s106
      %p115 = scmp.eq.s32.totalorder %s27, 0
      %p116 = por %p114, %p115
      %p117 = scmp.ne.s32.totalorder %s105, %s106
      %p118 = scmp.eq.s32.totalorder %s28, 1
      %p119 = por %p117, %p118
      %p121 = scmp.ne.s32.totalorder %s106, %s120
      %p122 = scmp.eq.s32.totalorder %s28, 0
      %p123 = por %p121, %p122
      %s125 = sadd.s32 %s124, 1
      %p128 = scmp.eq.s32.totalorder %s22, 1
      %p129 = scmp.ne.s32.totalorder %s124, %s126
      %p130 = scmp.eq.s32.totalorder %s22, 0
      %p131 = por %p129, %p130
      %p132 = scmp.ne.s32.totalorder %s124, %s126
      %p133 = scmp.eq.s32.totalorder %s27, 1
      %p134 = por %p132, %p133
      %p135 = scmp.ne.s32.totalorder %s126, %s127
      %p136 = scmp.eq.s32.totalorder %s27, 0
      %p137 = por %p135, %p136
      %p138 = scmp.ne.s32.totalorder %s126, %s127
      %p139 = scmp.eq.s32.totalorder %s28, 1
      %p140 = por %p138, %p139
      %p142 = scmp.ne.s32.totalorder %s127, %s141
      %p143 = scmp.eq.s32.totalorder %s28, 0
      %p144 = por %p142, %p143
      %s146 = sadd.s32 %s145, 1
      %p149 = scmp.eq.s32.totalorder %s22, 1
      %p150 = scmp.ne.s32.totalorder %s145, %s147
      %p151 = scmp.eq.s32.totalorder %s22, 0
      %p152 = por %p150, %p151
      %p153 = scmp.ne.s32.totalorder %s145, %s147
      %p154 = scmp.eq.s32.totalorder %s27, 1
      %p155 = por %p153, %p154
      %p156 = scmp.ne.s32.totalorder %s147, %s148
      %p157 = scmp.eq.s32.totalorder %s27, 0
      %p158 = por %p156, %p157
      %p159 = scmp.ne.s32.totalorder %s147, %s148
      %p160 = scmp.eq.s32.totalorder %s28, 1
      %p161 = por %p159, %p160
      %p163 = scmp.ne.s32.totalorder %s148, %s162
      %p164 = scmp.eq.s32.totalorder %s28, 0
      %p165 = por %p163, %p164
      %s167 = sadd.s32 %s166, 1
      %p170 = scmp.eq.s32.totalorder %s22, 1
      %p171 = scmp.ne.s32.totalorder %s166, %s168
      %p172 = scmp.eq.s32.totalorder %s22, 0
      %p173 = por %p171, %p172
      %p174 = scmp.ne.s32.totalorder %s166, %s168
      %p175 = scmp.eq.s32.totalorder %s27, 1
      %p176 = por %p174, %p175
      %p177 = scmp.ne.s32.totalorder %s168, %s169
      %p178 = scmp.eq.s32.totalorder %s27, 0
      %p179 = por %p177, %p178
      %p180 = scmp.ne.s32.totalorder %s168, %s169
      %p181 = scmp.eq.s32.totalorder %s28, 1
      %p182 = por %p180, %p181
      %p184 = scmp.ne.s32.totalorder %s169, %s183
      %p185 = scmp.eq.s32.totalorder %s28, 0
      %p186 = por %p184, %p185
      %s188 = sadd.s32 %s187, 1
      %p191 = scmp.eq.s32.totalorder %s22, 1
      %p192 = scmp.ne.s32.totalorder %s187, %s189
      %p193 = scmp.eq.s32.totalorder %s22, 0
      %p194 = por %p192, %p193
      %p195 = scmp.ne.s32.totalorder %s187, %s189
      %p196 = scmp.eq.s32.totalorder %s27, 1
      %p197 = por %p195, %p196
      %p198 = scmp.ne.s32.totalorder %s189, %s190
      %p199 = scmp.eq.s32.totalorder %s27, 0
      %p200 = por %p198, %p199
      %p201 = scmp.ne.s32.totalorder %s189, %s190
      %p202 = scmp.eq.s32.totalorder %s28, 1
      %p203 = por %p201, %p202
      %p205 = scmp.ne.s32.totalorder %s190, %s204
      %p206 = scmp.eq.s32.totalorder %s28, 0
      %p207 = por %p205, %p206
      %s209 = sadd.s32 %s208, 1
      %p212 = scmp.eq.s32.totalorder %s22, 1
      %p213 = scmp.ne.s32.totalorder %s208, %s210
      %p214 = scmp.eq.s32.totalorder %s22, 0
      %p215 = por %p213, %p214
      %p216 = scmp.ne.s32.totalorder %s208, %s210
      %p217 = scmp.eq.s32.totalorder %s27, 1
      %p218 = por %p216, %p217
      %p219 = scmp.ne.s32.totalorder %s210, %s211
      %p220 = scmp.eq.s32.totalorder %s27, 0
      %p221 = por %p219, %p220
      %p222 = scmp.ne.s32.totalorder %s210, %s211
      %p223 = scmp.eq.s32.totalorder %s28, 1
      %p224 = por %p222, %p223
      %p226 = scmp.ne.s32.totalorder %s211, %s225
      %p227 = scmp.eq.s32.totalorder %s28, 0
      %p228 = por %p226, %p227
      %s230 = sadd.s32 %s229, 1
      %p233 = scmp.eq.s32.totalorder %s22, 1
      %p234 = scmp.ne.s32.totalorder %s229, %s231
      %p235 = scmp.eq.s32.totalorder %s22, 0
      %p236 = por %p234, %p235
      %p237 = scmp.ne.s32.totalorder %s229, %s231
      %p238 = scmp.eq.s32.totalorder %s27, 1
      %p239 = por %p237, %p238
      %p240 = scmp.ne.s32.totalorder %s231, %s232
      %p241 = scmp.eq.s32.totalorder %s27, 0
      %p242 = por %p240, %p241
      %p243 = scmp.ne.s32.totalorder %s231, %s232
      %p244 = scmp.eq.s32.totalorder %s28, 1
      %p245 = por %p243, %p244
      %p247 = scmp.ne.s32.totalorder %s232, %s246
      %p248 = scmp.eq.s32.totalorder %s28, 0
      %p249 = por %p247, %p248
      %s251 = sadd.s32 %s250, 1
      %p254 = scmp.eq.s32.totalorder %s22, 1
      %p255 = scmp.ne.s32.totalorder %s250, %s252
      %p256 = scmp.eq.s32.totalorder %s22, 0
      %p257 = por %p255, %p256
      %p258 = scmp.ne.s32.totalorder %s250, %s252
      %p259 = scmp.eq.s32.totalorder %s27, 1
      %p260 = por %p258, %p259
      %p261 = scmp.ne.s32.totalorder %s252, %s253
      %p262 = scmp.eq.s32.totalorder %s27, 0
      %p263 = por %p261, %p262
      %p264 = scmp.ne.s32.totalorder %s252, %s253
      %p265 = scmp.eq.s32.totalorder %s28, 1
      %p266 = por %p264, %p265
      %p268 = scmp.ne.s32.totalorder %s253, %s267
      %p269 = scmp.eq.s32.totalorder %s28, 0
      %p270 = por %p268, %p269
      %s271 = ssub.s32 %s22, %s29
      %p272 = scmp.eq.s32.totalorder %s271, 0
      %s274 = sadd.s32 %s273, 1
      %s275 = scalar_select %p272, %s273, %s274
      %p278 = pneg %p272
      %p279 = scmp.eq.s32.totalorder %s22, 1
      %p280 = por %p278, %p279
      %p281 = scmp.ne.s32.totalorder %s273, %s276
      %p282 = scmp.eq.s32.totalorder %s22, 0
      %p283 = por %p281, %p282
      %p284 = scmp.ne.s32.totalorder %s273, %s276
      %p285 = scmp.eq.s32.totalorder %s27, 1
      %p286 = por %p284, %p285
      %p287 = scmp.ne.s32.totalorder %s276, %s277
      %p288 = scmp.eq.s32.totalorder %s27, 0
      %p289 = por %p287, %p288
      %p290 = scmp.ne.s32.totalorder %s276, %s277
      %p291 = scmp.eq.s32.totalorder %s28, 1
      %p292 = por %p290, %p291
      %p294 = scmp.ne.s32.totalorder %s277, %s293
      %p295 = scmp.eq.s32.totalorder %s28, 0
      %p296 = por %p294, %p295
      %p297 = scmp.le.s32.totalorder 1, %s22
      %p298 = scmp.lt.s32.totalorder %s22, 3
      %p299 = pnand %p297, %p298
      %p300 = pneg %p299
      // Predicated region
      $region9: #{tpu_custom_call.1} parent=5 // pred_check
        _
      $region10: #{tpu_custom_call.1} parent=5 // pred_check_branch
        %302 = sbr.rel (%p299) target = $region12
      $region11: #{tpu_custom_call.1} parent=5 // pred_region
        %s303 = ssub.s32 %s22, 1
        // Predicated region
        $region13: #{tpu_custom_call.1} parent=11 // pred_check
          %p304 = pneg %p95
        $region14: #{tpu_custom_call.1} parent=11 // pred_check_branch
          %306 = sbr.rel (%p304) target = $region16
        $region15: #{tpu_custom_call.1} parent=11 // pred_region
          _
        $region16: #{tpu_custom_call.1} parent=11 // pred_fallthru
          _
        // Predicated region
        $region17: #{tpu_custom_call.1} parent=11 // pred_check
          %p307 = pneg %p116
        $region18: #{tpu_custom_call.1} parent=11 // pred_check_branch
          %309 = sbr.rel (%p307) target = $region20
        $region19: #{tpu_custom_call.1} parent=11 // pred_region
          _
        $region20: #{tpu_custom_call.1} parent=11 // pred_fallthru
          _
        // Predicated region
        $region21: #{tpu_custom_call.1} parent=11 // pred_check
          %p310 = pneg %p137
        $region22: #{tpu_custom_call.1} parent=11 // pred_check_branch
          %312 = sbr.rel (%p310) target = $region24
        $region23: #{tpu_custom_call.1} parent=11 // pred_region
          %s314 = ssub.s32 256, 256
          %315 = vsyncadd [#allocation3], %s314
          %s316 = sshll.u32 [#allocation2], 4
          %s317 = int_to_ptr.vmem [resolvable:$true] %s316
          %322 = dma.hbm_to_vmem [thread:$0]  %s4, 256, %s317, [#allocation3], 64, 64, 4
        $region24: #{tpu_custom_call.1} parent=11 // pred_fallthru
          _
        // Predicated region
        $region25: #{tpu_custom_call.1} parent=11 // pred_check
          %p323 = pneg %p158
        $region26: #{tpu_custom_call.1} parent=11 // pred_check_branch
          %325 = sbr.rel (%p323) target = $region28
        $region27: #{tpu_custom_call.1} parent=11 // pred_region
          _
        $region28: #{tpu_custom_call.1} parent=11 // pred_fallthru
          _
        // Predicated region
        $region29: #{tpu_custom_call.1} parent=11 // pred_check
          %p326 = pneg %p179
        $region30: #{tpu_custom_call.1} parent=11 // pred_check_branch
          %328 = sbr.rel (%p326) target = $region32
        $region31: #{tpu_custom_call.1} parent=11 // pred_region
          %s330 = ssub.s32 256, 256
          %331 = vsyncadd [#allocation6], %s330
          %s332 = sshll.u32 [#allocation5], 4
          %s333 = int_to_ptr.vmem [resolvable:$true] %s332
          %338 = dma.hbm_to_vmem [thread:$0]  %s6, 256, %s333, [#allocation6], 64, 64, 4
        $region32: #{tpu_custom_call.1} parent=11 // pred_fallthru
          _
        // Predicated region
        $region33: #{tpu_custom_call.1} parent=11 // pred_check
          %p339 = pneg %p200
        $region34: #{tpu_custom_call.1} parent=11 // pred_check_branch
          %341 = sbr.rel (%p339) target = $region36
        $region35: #{tpu_custom_call.1} parent=11 // pred_region
          _
        $region36: #{tpu_custom_call.1} parent=11 // pred_fallthru
          _
        // Predicated region
        $region37: #{tpu_custom_call.1} parent=11 // pred_check
          %p342 = pneg %p221
        $region38: #{tpu_custom_call.1} parent=11 // pred_check_branch
          %344 = sbr.rel (%p342) target = $region40
        $region39: #{tpu_custom_call.1} parent=11 // pred_region
          _
        $region40: #{tpu_custom_call.1} parent=11 // pred_fallthru
          _
        // Predicated region
        $region41: #{tpu_custom_call.1} parent=11 // pred_check
          %p345 = pneg %p242
        $region42: #{tpu_custom_call.1} parent=11 // pred_check_branch
          %347 = sbr.rel (%p345) target = $region44
        $region43: #{tpu_custom_call.1} parent=11 // pred_region
          _
        $region44: #{tpu_custom_call.1} parent=11 // pred_fallthru
          _
        // Predicated region
        $region45: #{tpu_custom_call.1} parent=11 // pred_check
          %p348 = pneg %p263
        $region46: #{tpu_custom_call.1} parent=11 // pred_check_branch
          %350 = sbr.rel (%p348) target = $region48
        $region47: #{tpu_custom_call.1} parent=11 // pred_region
          _
        $region48: #{tpu_custom_call.1} parent=11 // pred_fallthru
          _
      $region12: #{tpu_custom_call.1} parent=5 // pred_fallthru
        _
      %p351 = scmp.lt.s32.totalorder %s22, 2
      // Predicated region
      $region49: #{tpu_custom_call.1} parent=5 // pred_check
        %p352 = pneg %p351
      $region50: #{tpu_custom_call.1} parent=5 // pred_check_branch
        %354 = sbr.rel (%p352) target = $region52
      $region51: #{tpu_custom_call.1} parent=5 // pred_region
        // Predicated region
        $region53: #{tpu_custom_call.1} parent=51 // pred_check
          %p355 = pneg %p42
        $region54: #{tpu_custom_call.1} parent=51 // pred_check_branch
          %357 = sbr.rel (%p355) target = $region56
        $region55: #{tpu_custom_call.1} parent=51 // pred_region
          %p358 = scmp.lt.s32.totalorder %s22, 1
          %s359 = scalar_select %p358, %s22, 1
          %s360 = smul.addr %s359, 8
          %s361 = scalar_lea.vmem %s0, %s360
        $region56: #{tpu_custom_call.1} parent=51 // pred_fallthru
          _
        // Predicated region
        $region57: #{tpu_custom_call.1} parent=51 // pred_check
          %p362 = pneg %p68
        $region58: #{tpu_custom_call.1} parent=51 // pred_check_branch
          %364 = sbr.rel (%p362) target = $region60
        $region59: #{tpu_custom_call.1} parent=51 // pred_region
          %p365 = scmp.lt.s32.totalorder %s22, 1
          %s366 = scalar_select %p365, %s22, 1
          %s367 = smul.addr %s366, 8
          %s368 = scalar_lea.vmem %s1, %s367
        $region60: #{tpu_custom_call.1} parent=51 // pred_fallthru
          _
      $region52: #{tpu_custom_call.1} parent=5 // pred_fallthru
        _
      %p369 = scmp.le.s32.totalorder 1, %s22
      %p370 = scmp.lt.s32.totalorder %s22, 3
      %p371 = pnand %p369, %p370
      %p372 = pneg %p371
      // Predicated region
      $region61: #{tpu_custom_call.1} parent=5 // pred_check
        _
      $region62: #{tpu_custom_call.1} parent=5 // pred_check_branch
        %374 = sbr.rel (%p371) target = $region64
      $region63: #{tpu_custom_call.1} parent=5 // pred_region
        %s375 = ssub.s32 %s22, 1
        // Predicated region
        $region65: #{tpu_custom_call.1} parent=63 // pred_check
          %p376 = pneg %p137
        $region66: #{tpu_custom_call.1} parent=63 // pred_check_branch
          %378 = sbr.rel (%p376) target = $region68
        $region67: #{tpu_custom_call.1} parent=63 // pred_region
          %379 = dma.done [#allocation3], 256
        $region68: #{tpu_custom_call.1} parent=63 // pred_fallthru
          _
        // Predicated region
        $region69: #{tpu_custom_call.1} parent=63 // pred_check
          %p380 = pneg %p179
        $region70: #{tpu_custom_call.1} parent=63 // pred_check_branch
          %382 = sbr.rel (%p380) target = $region72
        $region71: #{tpu_custom_call.1} parent=63 // pred_region
          %383 = dma.done [#allocation6], 256
        $region72: #{tpu_custom_call.1} parent=63 // pred_fallthru
          _
        %p384 = scmp.lt.s32.totalorder %s27, 1
        %s385 = scalar_select %p384, %s27, 1
        %s386 = smul.addr %s385, 8
        %s387 = scalar_lea.vmem %s0, %s386
        %p388 = pneg %p48
        %p389 = pneg %p45
        %p390 = scmp.lt.s32.totalorder %s27, 1
        %s391 = scalar_select %p390, %s27, 1
        %s392 = smul.addr %s391, 8
        %s393 = scalar_lea.vmem %s1, %s392
        %p394 = pneg %p74
        %p395 = pneg %p71
        %p396 = pneg %p95
        %p397 = pneg %p92
        %p398 = pneg %p116
        %p399 = pneg %p113
        %p400 = pneg %p137
        %p401 = pneg %p134
        %p402 = pneg %p158
        %p403 = pneg %p155
        %p404 = pneg %p179
        %p405 = pneg %p176
        %p406 = pneg %p200
        %p407 = pneg %p197
        %p408 = pneg %p221
        %p409 = pneg %p218
        %p410 = pneg %p242
        %p411 = pneg %p239
        %p412 = pneg %p263
        %p413 = pneg %p260
        %p414 = pneg %p289
        %p415 = pneg %p286
        %s416 = sand.u32 %s276, 1
        %s417 = scalar_lea.sflag [#allocation4], %s416
        %s418 = sand.u32 %s276, 1
        %s419 = smul.addr %s418, 8
        %s420 = scalar_lea.vmem [#allocation7], %s419
        %p421 = scmp.lt.s32.totalorder %s27, 1
        %s422 = scalar_select %p421, %s27, 1
        %s423 = smul.addr %s422, 8
        %s424 = scalar_lea.vmem %s0, %s423
        %p425 = scmp.lt.s32.totalorder %s27, 1
        %s426 = scalar_select %p425, %s27, 1
        %s427 = smul.addr %s426, 8
        %s428 = scalar_lea.vmem %s1, %s427
        %v430 = vld [vmem:[%s424] sm:$0xff]
        %v431 = vld [vmem:[%s10] sm:$0xf]
        %vm432 = vcmask 261120
        %v433 = vsel %vm432, %v430, 0.0
        %434 = vadd.xlane.f32.xlu0 %v433
        %v435 = vpop.xlane.xlu0 %434
        %v436 = vrcp.pop 32.0
        %v437 = vmul.f32 %v435, %v436
        %v438 = vsub.f32 %v430, %v437
        %v439 = vmul.f32 %v438, %v438
        %v440 = vsel %vm432, %v439, 0.0
        %441 = vadd.xlane.f32.xlu0 %v440
        %v442 = vpop.xlane.xlu0 %441
        %v443 = vmul.f32 %v442, %v436
        %v444 = vadd.f32 %v443, 1e-05
        %v445 = vrsqrt.pop %v444
        %v446 = vmul.f32 %v438, %v445
        %v447 = vlaneseq
        %v448 = vshrl.u32 %v447, 7
        %v449 = vsub.s32 0, %v448
        %v450 = vrot.slane %v431, %v449
        %v451 = vmul.f32 %v446, %v450
        %v452 = vlaneseq
        %v453 = vshrl.u32 %v452, 7
        %v454 = vsub.s32 1, %v453
        %v455 = vrot.slane %v431, %v454
        %v456 = vadd.f32 %v451, %v455
        %v457 = vpack.c.bf16 %v456, %v456
        %v458 = vld [vmem:[%s2] sm:$0xf]
        %v459 = vld [vmem:[%s2 + $0x4] sm:$0xf]
        %v460 = vld [vmem:[%s2 + $0x8] sm:$0xf]
        %v461 = vld [vmem:[%s2 + $0xc] sm:$0xf]
        %v462 = vld [vmem:[%s3] sm:$0x1]
        %v464 = vlaneseq
        %v465 = vshrl.u32 %v464, 7
        %v466 = vsub.s32 0, %v465
        %v467 = vrot.slane %v462, %v466
        %v473 = vunpack.c.l.b16 %v458
        %v474 = vunpack.c.l.b16 %v459
        %v475 = vunpack.c.l.b16 %v460
        %v476 = vunpack.c.l.b16 %v461
        %v477 = vpack.c.b16 %v474, %v473
        %v478 = vpack.c.b16 %v476, %v475
        %v482 = vsel %vm432, %v457, 0
        %484 = vmatprep.subr.bf16.mxu0 0
        %485 = vmatpush1.bf16.msra.mxu0 0
        %486 = vmatprep.subr.bf16.mxu0 0
        %487 = vmatpush1.bf16.msra.mxu0 0
        %488 = vmatprep.subr.bf16.mxu0 0
        %489 = vmatpush1.bf16.msra.mxu0 0
        %490 = vmatprep.subr.bf16.mxu0 0
        %491 = vmatpush1.bf16.msra.mxu0 0
        %492 = vmatprep.subr.bf16.mxu0 0
        %493 = vmatpush1.bf16.msra.mxu0 0
        %494 = vmatprep.subr.bf16.mxu0 0
        %495 = vmatpush1.bf16.msra.mxu0 0
        %496 = vmatprep.subr.bf16.mxu0 0
        %497 = vmatpush1.bf16.msra.mxu0 %v478
        %498 = vmatprep.subr.bf16.mxu0 0
        %499 = vmatpush1.bf16.msra.mxu0 %v477
        %500 = vmatprep.subr.bf16.mxu0 0
        %501 = vmatpush2.bf16.msra.mxu0 0
        %502 = vmatprep.subr.bf16.mxu0 0
        %503 = vmatpush2.bf16.msra.mxu0 0
        %504 = vmatprep.subr.bf16.mxu0 0
        %505 = vmatpush2.bf16.msra.mxu0 0
        %506 = vmatprep.subr.bf16.mxu0 0
        %507 = vmatpush2.bf16.msra.mxu0 0
        %508 = vmatprep.subr.bf16.mxu0 0
        %509 = vmatpush2.bf16.msra.mxu0 0
        %510 = vmatprep.subr.bf16.mxu0 0
        %511 = vmatpush2.bf16.msra.mxu0 0
        %512 = vmatprep.subr.bf16.mxu0 0
        %513 = vmatpush2.bf16.msra.mxu0 0
        %514 = vmatprep.subr.bf16.mxu0 0
        %515 = vmatpush2.bf16.msra.mxu0 0
        %516 = vmatprep.mubr.bf16.mxu0 0
        %517 = vmatmul.mubr.bf16.gmra.mxu0 %v482
        %v518 = vpop.f32.mrf.mxu0
        %v519 = vadd.f32 %v467, %v518
        %v520 = vpop.f32.mrf.mxu0
        %v521 = vpop.f32.mrf.mxu0
        %v522 = vpop.f32.mrf.mxu0
        %523 = vdwg.mxu0
        %v524 = vld [vmem:[%s428] sm:$0xff]
        %v525 = vpack.c.bf16 %v519, %v519
        %527 = vrot.lane.b32.xlu0 %v525, 96
        %v528 = vpop.permute.xlu0 %527
        %vm529 = vcmask 64512
        %v531 = vsel %vm529, %v525, 0
        %v534 = vsel %vm529, %v528, 0
        %536 = vmatprep.subr.bf16.mxu0 0
        %537 = vmatpush1.bf16.xpose.msra.mxu0 0
        %538 = vmatprep.subr.bf16.mxu0 0
        %539 = vmatpush1.bf16.xpose.msra.mxu0 0
        %540 = vmatprep.subr.bf16.mxu0 0
        %541 = vmatpush1.bf16.xpose.msra.mxu0 0
        %542 = vmatprep.subr.bf16.mxu0 0
        %543 = vmatpush1.bf16.xpose.msra.mxu0 0
        %544 = vmatprep.subr.bf16.mxu0 0
        %545 = vmatpush1.bf16.xpose.msra.mxu0 0
        %546 = vmatprep.subr.bf16.mxu0 0
        %547 = vmatpush1.bf16.xpose.msra.mxu0 0
        %548 = vmatprep.subr.bf16.mxu0 0
        %549 = vmatpush1.bf16.xpose.msra.mxu0 0
        %550 = vmatprep.subr.bf16.mxu0 0
        %551 = vmatpush1.bf16.xpose.msra.mxu0 %v534
        %552 = vmatprep.subr.bf16.mxu0 0
        %553 = vmatpush2.bf16.xpose.msra.mxu0 0
        %554 = vmatprep.subr.bf16.mxu0 0
        %555 = vmatpush2.bf16.xpose.msra.mxu0 0
        %556 = vmatprep.subr.bf16.mxu0 0
        %557 = vmatpush2.bf16.xpose.msra.mxu0 0
        %558 = vmatprep.subr.bf16.mxu0 0
        %559 = vmatpush2.bf16.xpose.msra.mxu0 0
        %560 = vmatprep.subr.bf16.mxu0 0
        %561 = vmatpush2.bf16.xpose.msra.mxu0 0
        %562 = vmatprep.subr.bf16.mxu0 0
        %563 = vmatpush2.bf16.xpose.msra.mxu0 0
        %564 = vmatprep.subr.bf16.mxu0 0
        %565 = vmatpush2.bf16.xpose.msra.mxu0 0
        %566 = vmatprep.subr.bf16.mxu0 0
        %567 = vmatpush2.bf16.xpose.msra.mxu0 0
        %568 = vmatprep.mubr.bf16.mxu0 0
        %569 = vmatmul.mubr.bf16.gmra.mxu0 %v531
        %v570 = vpop.f32.mrf.mxu0
        %v571 = vadd.f32 0.0, %v570
        %v572 = vpop.f32.mrf.mxu0
        %v573 = vpop.f32.mrf.mxu0
        %v574 = vpop.f32.mrf.mxu0
        %575 = vdwg.mxu0
        %vm576 = vcmp.eq.f32.partialorder %v524, 0.0
        %v577 = vsel %vm576, -1e+09, %v571
        %v578 = vsel %vm529, %v577, -inf
        %579 = vmax.xlane.f32.xlu0 %v578
        %v580 = vpop.xlane.xlu0 %579
        %v581 = vsub.f32 %v577, %v580
        %v582 = vmul.f32 %v581, 1.442695
        %v583 = vpow.pop %v582
        %v584 = vsel %vm529, %v583, 0.0
        %585 = vadd.xlane.f32.xlu0 %v584
        %v586 = vpop.xlane.xlu0 %585
        %v587 = vrcp.pop %v586
        %v588 = vmul.f32 %v583, %v587
        %v589 = vpack.c.bf16 %v588, %v588
        %590 = vrot.lane.b32.xlu0 %v525, 64
        %v591 = vpop.permute.xlu0 %590
        %v593 = vsel %vm529, %v589, 0
        %vm595 = vcmask 1043456
        %v597 = vsel %vm595, %v591, 0
        %599 = vmatprep.subr.bf16.mxu0 0
        %600 = vmatpush1.bf16.msra.mxu0 0
        %601 = vmatprep.subr.bf16.mxu0 0
        %602 = vmatpush1.bf16.msra.mxu0 0
        %603 = vmatprep.subr.bf16.mxu0 0
        %604 = vmatpush1.bf16.msra.mxu0 0
        %605 = vmatprep.subr.bf16.mxu0 0
        %606 = vmatpush1.bf16.msra.mxu0 0
        %607 = vmatprep.subr.bf16.mxu0 0
        %608 = vmatpush1.bf16.msra.mxu0 0
        %609 = vmatprep.subr.bf16.mxu0 0
        %610 = vmatpush1.bf16.msra.mxu0 0
        %611 = vmatprep.subr.bf16.mxu0 0
        %612 = vmatpush1.bf16.msra.mxu0 0
        %613 = vmatprep.subr.bf16.mxu0 0
        %614 = vmatpush1.bf16.msra.mxu0 %v597
        %615 = vmatprep.subr.bf16.mxu0 0
        %616 = vmatpush2.bf16.msra.mxu0 0
        %617 = vmatprep.subr.bf16.mxu0 0
        %618 = vmatpush2.bf16.msra.mxu0 0
        %619 = vmatprep.subr.bf16.mxu0 0
        %620 = vmatpush2.bf16.msra.mxu0 0
        %621 = vmatprep.subr.bf16.mxu0 0
        %622 = vmatpush2.bf16.msra.mxu0 0
        %623 = vmatprep.subr.bf16.mxu0 0
        %624 = vmatpush2.bf16.msra.mxu0 0
        %625 = vmatprep.subr.bf16.mxu0 0
        %626 = vmatpush2.bf16.msra.mxu0 0
        %627 = vmatprep.subr.bf16.mxu0 0
        %628 = vmatpush2.bf16.msra.mxu0 0
        %629 = vmatprep.subr.bf16.mxu0 0
        %630 = vmatpush2.bf16.msra.mxu0 0
        %631 = vmatprep.mubr.bf16.mxu0 0
        %632 = vmatmul.mubr.bf16.gmra.mxu0 %v593
        %v633 = vpop.f32.mrf.mxu0
        %v634 = vadd.f32 0.0, %v633
        %v635 = vpop.f32.mrf.mxu0
        %v636 = vpop.f32.mrf.mxu0
        %v637 = vpop.f32.mrf.mxu0
        %638 = vdwg.mxu0
        %639 = vrot.lane.b32.xlu0 %v525, 120
        %v640 = vpop.permute.xlu0 %639
        %641 = vrot.lane.b32.xlu0 %v525, 88
        %v642 = vpop.permute.xlu0 %641
        %v644 = vsel %vm529, %v640, 0
        %v647 = vsel %vm529, %v642, 0
        %649 = vmatprep.subr.bf16.mxu0 0
        %650 = vmatpush1.bf16.xpose.msra.mxu0 0
        %651 = vmatprep.subr.bf16.mxu0 0
        %652 = vmatpush1.bf16.xpose.msra.mxu0 0
        %653 = vmatprep.subr.bf16.mxu0 0
        %654 = vmatpush1.bf16.xpose.msra.mxu0 0
        %655 = vmatprep.subr.bf16.mxu0 0
        %656 = vmatpush1.bf16.xpose.msra.mxu0 0
        %657 = vmatprep.subr.bf16.mxu0 0
        %658 = vmatpush1.bf16.xpose.msra.mxu0 0
        %659 = vmatprep.subr.bf16.mxu0 0
        %660 = vmatpush1.bf16.xpose.msra.mxu0 0
        %661 = vmatprep.subr.bf16.mxu0 0
        %662 = vmatpush1.bf16.xpose.msra.mxu0 0
        %663 = vmatprep.subr.bf16.mxu0 0
        %664 = vmatpush1.bf16.xpose.msra.mxu0 %v647
        %665 = vmatprep.subr.bf16.mxu0 0
        %666 = vmatpush2.bf16.xpose.msra.mxu0 0
        %667 = vmatprep.subr.bf16.mxu0 0
        %668 = vmatpush2.bf16.xpose.msra.mxu0 0
        %669 = vmatprep.subr.bf16.mxu0 0
        %670 = vmatpush2.bf16.xpose.msra.mxu0 0
        %671 = vmatprep.subr.bf16.mxu0 0
        %672 = vmatpush2.bf16.xpose.msra.mxu0 0
        %673 = vmatprep.subr.bf16.mxu0 0
        %674 = vmatpush2.bf16.xpose.msra.mxu0 0
        %675 = vmatprep.subr.bf16.mxu0 0
        %676 = vmatpush2.bf16.xpose.msra.mxu0 0
        %677 = vmatprep.subr.bf16.mxu0 0
        %678 = vmatpush2.bf16.xpose.msra.mxu0 0
        %679 = vmatprep.subr.bf16.mxu0 0
        %680 = vmatpush2.bf16.xpose.msra.mxu0 0
        %681 = vmatprep.mubr.bf16.mxu0 0
        %682 = vmatmul.mubr.bf16.gmra.mxu0 %v644
        %v683 = vpop.f32.mrf.mxu0
        %v684 = vadd.f32 0.0, %v683
        %v685 = vpop.f32.mrf.mxu0
        %v686 = vpop.f32.mrf.mxu0
        %v687 = vpop.f32.mrf.mxu0
        %688 = vdwg.mxu0
        %v689 = vsel %vm576, -1e+09, %v684
        %v690 = vsel %vm529, %v689, -inf
        %691 = vmax.xlane.f32.xlu0 %v690
        %v692 = vpop.xlane.xlu0 %691
        %v693 = vsub.f32 %v689, %v692
        %v694 = vmul.f32 %v693, 1.442695
        %v695 = vpow.pop %v694
        %v696 = vsel %vm529, %v695, 0.0
        %697 = vadd.xlane.f32.xlu0 %v696
        %v698 = vpop.xlane.xlu0 %697
        %v699 = vrcp.pop %v698
        %v700 = vmul.f32 %v695, %v699
        %v701 = vpack.c.bf16 %v700, %v700
        %702 = vrot.lane.b32.xlu0 %v525, 56
        %v703 = vpop.permute.xlu0 %702
        %v705 = vsel %vm529, %v701, 0
        %v708 = vsel %vm595, %v703, 0
        %710 = vmatprep.subr.bf16.mxu0 0
        %711 = vmatpush1.bf16.msra.mxu0 0
        %712 = vmatprep.subr.bf16.mxu0 0
        %713 = vmatpush1.bf16.msra.mxu0 0
        %714 = vmatprep.subr.bf16.mxu0 0
        %715 = vmatpush1.bf16.msra.mxu0 0
        %716 = vmatprep.subr.bf16.mxu0 0
        %717 = vmatpush1.bf16.msra.mxu0 0
        %718 = vmatprep.subr.bf16.mxu0 0
        %719 = vmatpush1.bf16.msra.mxu0 0
        %720 = vmatprep.subr.bf16.mxu0 0
        %721 = vmatpush1.bf16.msra.mxu0 0
        %722 = vmatprep.subr.bf16.mxu0 0
        %723 = vmatpush1.bf16.msra.mxu0 0
        %724 = vmatprep.subr.bf16.mxu0 0
        %725 = vmatpush1.bf16.msra.mxu0 %v708
        %726 = vmatprep.subr.bf16.mxu0 0
        %727 = vmatpush2.bf16.msra.mxu0 0
        %728 = vmatprep.subr.bf16.mxu0 0
        %729 = vmatpush2.bf16.msra.mxu0 0
        %730 = vmatprep.subr.bf16.mxu0 0
        %731 = vmatpush2.bf16.msra.mxu0 0
        %732 = vmatprep.subr.bf16.mxu0 0
        %733 = vmatpush2.bf16.msra.mxu0 0
        %734 = vmatprep.subr.bf16.mxu0 0
        %735 = vmatpush2.bf16.msra.mxu0 0
        %736 = vmatprep.subr.bf16.mxu0 0
        %737 = vmatpush2.bf16.msra.mxu0 0
        %738 = vmatprep.subr.bf16.mxu0 0
        %739 = vmatpush2.bf16.msra.mxu0 0
        %740 = vmatprep.subr.bf16.mxu0 0
        %741 = vmatpush2.bf16.msra.mxu0 0
        %742 = vmatprep.mubr.bf16.mxu0 0
        %743 = vmatmul.mubr.bf16.gmra.mxu0 %v705
        %v744 = vpop.f32.mrf.mxu0
        %v745 = vadd.f32 0.0, %v744
        %v746 = vpop.f32.mrf.mxu0
        %v747 = vpop.f32.mrf.mxu0
        %v748 = vpop.f32.mrf.mxu0
        %749 = vdwg.mxu0
        %750 = vrot.lane.b32.xlu0 %v525, 112
        %v751 = vpop.permute.xlu0 %750
        %752 = vrot.lane.b32.xlu0 %v525, 80
        %v753 = vpop.permute.xlu0 %752
        %v755 = vsel %vm529, %v751, 0
        %v758 = vsel %vm529, %v753, 0
        %760 = vmatprep.subr.bf16.mxu0 0
        %761 = vmatpush1.bf16.xpose.msra.mxu0 0
        %762 = vmatprep.subr.bf16.mxu0 0
        %763 = vmatpush1.bf16.xpose.msra.mxu0 0
        %764 = vmatprep.subr.bf16.mxu0 0
        %765 = vmatpush1.bf16.xpose.msra.mxu0 0
        %766 = vmatprep.subr.bf16.mxu0 0
        %767 = vmatpush1.bf16.xpose.msra.mxu0 0
        %768 = vmatprep.subr.bf16.mxu0 0
        %769 = vmatpush1.bf16.xpose.msra.mxu0 0
        %770 = vmatprep.subr.bf16.mxu0 0
        %771 = vmatpush1.bf16.xpose.msra.mxu0 0
        %772 = vmatprep.subr.bf16.mxu0 0
        %773 = vmatpush1.bf16.xpose.msra.mxu0 0
        %774 = vmatprep.subr.bf16.mxu0 0
        %775 = vmatpush1.bf16.xpose.msra.mxu0 %v758
        %776 = vmatprep.subr.bf16.mxu0 0
        %777 = vmatpush2.bf16.xpose.msra.mxu0 0
        %778 = vmatprep.subr.bf16.mxu0 0
        %779 = vmatpush2.bf16.xpose.msra.mxu0 0
        %780 = vmatprep.subr.bf16.mxu0 0
        %781 = vmatpush2.bf16.xpose.msra.mxu0 0
        %782 = vmatprep.subr.bf16.mxu0 0
        %783 = vmatpush2.bf16.xpose.msra.mxu0 0
        %784 = vmatprep.subr.bf16.mxu0 0
        %785 = vmatpush2.bf16.xpose.msra.mxu0 0
        %786 = vmatprep.subr.bf16.mxu0 0
        %787 = vmatpush2.bf16.xpose.msra.mxu0 0
        %788 = vmatprep.subr.bf16.mxu0 0
        %789 = vmatpush2.bf16.xpose.msra.mxu0 0
        %790 = vmatprep.subr.bf16.mxu0 0
        %791 = vmatpush2.bf16.xpose.msra.mxu0 0
        %792 = vmatprep.mubr.bf16.mxu0 0
        %793 = vmatmul.mubr.bf16.gmra.mxu0 %v755
        %v794 = vpop.f32.mrf.mxu0
        %v795 = vadd.f32 0.0, %v794
        %v796 = vpop.f32.mrf.mxu0
        %v797 = vpop.f32.mrf.mxu0
        %v798 = vpop.f32.mrf.mxu0
        %799 = vdwg.mxu0
        %v800 = vsel %vm576, -1e+09, %v795
        %v801 = vsel %vm529, %v800, -inf
        %802 = vmax.xlane.f32.xlu0 %v801
        %v803 = vpop.xlane.xlu0 %802
        %v804 = vsub.f32 %v800, %v803
        %v805 = vmul.f32 %v804, 1.442695
        %v806 = vpow.pop %v805
        %v807 = vsel %vm529, %v806, 0.0
        %808 = vadd.xlane.f32.xlu0 %v807
        %v809 = vpop.xlane.xlu0 %808
        %v810 = vrcp.pop %v809
        %v811 = vmul.f32 %v806, %v810
        %v812 = vpack.c.bf16 %v811, %v811
        %813 = vrot.lane.b32.xlu0 %v525, 48
        %v814 = vpop.permute.xlu0 %813
        %v816 = vsel %vm529, %v812, 0
        %v819 = vsel %vm595, %v814, 0
        %821 = vmatprep.subr.bf16.mxu0 0
        %822 = vmatpush1.bf16.msra.mxu0 0
        %823 = vmatprep.subr.bf16.mxu0 0
        %824 = vmatpush1.bf16.msra.mxu0 0
        %825 = vmatprep.subr.bf16.mxu0 0
        %826 = vmatpush1.bf16.msra.mxu0 0
        %827 = vmatprep.subr.bf16.mxu0 0
        %828 = vmatpush1.bf16.msra.mxu0 0
        %829 = vmatprep.subr.bf16.mxu0 0
        %830 = vmatpush1.bf16.msra.mxu0 0
        %831 = vmatprep.subr.bf16.mxu0 0
        %832 = vmatpush1.bf16.msra.mxu0 0
        %833 = vmatprep.subr.bf16.mxu0 0
        %834 = vmatpush1.bf16.msra.mxu0 0
        %835 = vmatprep.subr.bf16.mxu0 0
        %836 = vmatpush1.bf16.msra.mxu0 %v819
        %837 = vmatprep.subr.bf16.mxu0 0
        %838 = vmatpush2.bf16.msra.mxu0 0
        %839 = vmatprep.subr.bf16.mxu0 0
        %840 = vmatpush2.bf16.msra.mxu0 0
        %841 = vmatprep.subr.bf16.mxu0 0
        %842 = vmatpush2.bf16.msra.mxu0 0
        %843 = vmatprep.subr.bf16.mxu0 0
        %844 = vmatpush2.bf16.msra.mxu0 0
        %845 = vmatprep.subr.bf16.mxu0 0
        %846 = vmatpush2.bf16.msra.mxu0 0
        %847 = vmatprep.subr.bf16.mxu0 0
        %848 = vmatpush2.bf16.msra.mxu0 0
        %849 = vmatprep.subr.bf16.mxu0 0
        %850 = vmatpush2.bf16.msra.mxu0 0
        %851 = vmatprep.subr.bf16.mxu0 0
        %852 = vmatpush2.bf16.msra.mxu0 0
        %853 = vmatprep.mubr.bf16.mxu0 0
        %854 = vmatmul.mubr.bf16.gmra.mxu0 %v816
        %v855 = vpop.f32.mrf.mxu0
        %v856 = vadd.f32 0.0, %v855
        %v857 = vpop.f32.mrf.mxu0
        %v858 = vpop.f32.mrf.mxu0
        %v859 = vpop.f32.mrf.mxu0
        %860 = vdwg.mxu0
        %861 = vrot.lane.b32.xlu0 %v525, 104
        %v862 = vpop.permute.xlu0 %861
        %863 = vrot.lane.b32.xlu0 %v525, 72
        %v864 = vpop.permute.xlu0 %863
        %v866 = vsel %vm529, %v862, 0
        %v869 = vsel %vm529, %v864, 0
        %871 = vmatprep.subr.bf16.mxu0 0
        %872 = vmatpush1.bf16.xpose.msra.mxu0 0
        %873 = vmatprep.subr.bf16.mxu0 0
        %874 = vmatpush1.bf16.xpose.msra.mxu0 0
        %875 = vmatprep.subr.bf16.mxu0 0
        %876 = vmatpush1.bf16.xpose.msra.mxu0 0
        %877 = vmatprep.subr.bf16.mxu0 0
        %878 = vmatpush1.bf16.xpose.msra.mxu0 0
        %879 = vmatprep.subr.bf16.mxu0 0
        %880 = vmatpush1.bf16.xpose.msra.mxu0 0
        %881 = vmatprep.subr.bf16.mxu0 0
        %882 = vmatpush1.bf16.xpose.msra.mxu0 0
        %883 = vmatprep.subr.bf16.mxu0 0
        %884 = vmatpush1.bf16.xpose.msra.mxu0 0
        %885 = vmatprep.subr.bf16.mxu0 0
        %886 = vmatpush1.bf16.xpose.msra.mxu0 %v869
        %887 = vmatprep.subr.bf16.mxu0 0
        %888 = vmatpush2.bf16.xpose.msra.mxu0 0
        %889 = vmatprep.subr.bf16.mxu0 0
        %890 = vmatpush2.bf16.xpose.msra.mxu0 0
        %891 = vmatprep.subr.bf16.mxu0 0
        %892 = vmatpush2.bf16.xpose.msra.mxu0 0
        %893 = vmatprep.subr.bf16.mxu0 0
        %894 = vmatpush2.bf16.xpose.msra.mxu0 0
        %895 = vmatprep.subr.bf16.mxu0 0
        %896 = vmatpush2.bf16.xpose.msra.mxu0 0
        %897 = vmatprep.subr.bf16.mxu0 0
        %898 = vmatpush2.bf16.xpose.msra.mxu0 0
        %899 = vmatprep.subr.bf16.mxu0 0
        %900 = vmatpush2.bf16.xpose.msra.mxu0 0
        %901 = vmatprep.subr.bf16.mxu0 0
        %902 = vmatpush2.bf16.xpose.msra.mxu0 0
        %903 = vmatprep.mubr.bf16.mxu0 0
        %904 = vmatmul.mubr.bf16.gmra.mxu0 %v866
        %v905 = vpop.f32.mrf.mxu0
        %v906 = vadd.f32 0.0, %v905
        %v907 = vpop.f32.mrf.mxu0
        %v908 = vpop.f32.mrf.mxu0
        %v909 = vpop.f32.mrf.mxu0
        %910 = vdwg.mxu0
        %v911 = vsel %vm576, -1e+09, %v906
        %v912 = vsel %vm529, %v911, -inf
        %913 = vmax.xlane.f32.xlu0 %v912
        %v914 = vpop.xlane.xlu0 %913
        %v915 = vsub.f32 %v911, %v914
        %v916 = vmul.f32 %v915, 1.442695
        %v917 = vpow.pop %v916
        %v918 = vsel %vm529, %v917, 0.0
        %919 = vadd.xlane.f32.xlu0 %v918
        %v920 = vpop.xlane.xlu0 %919
        %v921 = vrcp.pop %v920
        %v922 = vmul.f32 %v917, %v921
        %v923 = vpack.c.bf16 %v922, %v922
        %924 = vrot.lane.b32.xlu0 %v525, 40
        %v925 = vpop.permute.xlu0 %924
        %v927 = vsel %vm529, %v923, 0
        %v930 = vsel %vm595, %v925, 0
        %932 = vmatprep.subr.bf16.mxu0 0
        %933 = vmatpush1.bf16.msra.mxu0 0
        %934 = vmatprep.subr.bf16.mxu0 0
        %935 = vmatpush1.bf16.msra.mxu0 0
        %936 = vmatprep.subr.bf16.mxu0 0
        %937 = vmatpush1.bf16.msra.mxu0 0
        %938 = vmatprep.subr.bf16.mxu0 0
        %939 = vmatpush1.bf16.msra.mxu0 0
        %940 = vmatprep.subr.bf16.mxu0 0
        %941 = vmatpush1.bf16.msra.mxu0 0
        %942 = vmatprep.subr.bf16.mxu0 0
        %943 = vmatpush1.bf16.msra.mxu0 0
        %944 = vmatprep.subr.bf16.mxu0 0
        %945 = vmatpush1.bf16.msra.mxu0 0
        %946 = vmatprep.subr.bf16.mxu0 0
        %947 = vmatpush1.bf16.msra.mxu0 %v930
        %948 = vmatprep.subr.bf16.mxu0 0
        %949 = vmatpush2.bf16.msra.mxu0 0
        %950 = vmatprep.subr.bf16.mxu0 0
        %951 = vmatpush2.bf16.msra.mxu0 0
        %952 = vmatprep.subr.bf16.mxu0 0
        %953 = vmatpush2.bf16.msra.mxu0 0
        %954 = vmatprep.subr.bf16.mxu0 0
        %955 = vmatpush2.bf16.msra.mxu0 0
        %956 = vmatprep.subr.bf16.mxu0 0
        %957 = vmatpush2.bf16.msra.mxu0 0
        %958 = vmatprep.subr.bf16.mxu0 0
        %959 = vmatpush2.bf16.msra.mxu0 0
        %960 = vmatprep.subr.bf16.mxu0 0
        %961 = vmatpush2.bf16.msra.mxu0 0
        %962 = vmatprep.subr.bf16.mxu0 0
        %963 = vmatpush2.bf16.msra.mxu0 0
        %964 = vmatprep.mubr.bf16.mxu0 0
        %965 = vmatmul.mubr.bf16.gmra.mxu0 %v927
        %v966 = vpop.f32.mrf.mxu0
        %v967 = vadd.f32 0.0, %v966
        %v968 = vpop.f32.mrf.mxu0
        %v969 = vpop.f32.mrf.mxu0
        %v970 = vpop.f32.mrf.mxu0
        %971 = vdwg.mxu0
        %973 = vrot.lane.b32.xlu0 %v745, 8
        %v974 = vpop.permute.xlu0 %973
        %977 = vrot.lane.b32.xlu0 %v856, 16
        %v978 = vpop.permute.xlu0 %977
        %981 = vrot.lane.b32.xlu0 %v967, 24
        %v982 = vpop.permute.xlu0 %981
        %v984 = vsel %vm529, %v634, %v974
        %vm985 = vcmask 130048
        %v986 = vsel %vm985, %v984, %v978
        %vm987 = vcmask 195584
        %v988 = vsel %vm987, %v986, %v982
        %v989 = vpack.c.bf16 %v988, %v988
        %v990 = vld [vmem:[#allocation2] sm:$0xf]
        %v991 = vld [vmem:[#allocation2 + $0x4] sm:$0xf]
        %v992 = vld [vmem:[#allocation2 + $0x8] sm:$0xf]
        %v993 = vld [vmem:[#allocation2 + $0xc] sm:$0xf]
        %v994 = vld [vmem:[%s5] sm:$0x1]
        %v996 = vlaneseq
        %v997 = vshrl.u32 %v996, 7
        %v998 = vsub.s32 0, %v997
        %v999 = vrot.slane %v994, %v998
        %v1005 = vunpack.c.l.b16 %v990
        %v1006 = vunpack.c.l.b16 %v991
        %v1007 = vunpack.c.l.b16 %v992
        %v1008 = vunpack.c.l.b16 %v993
        %v1009 = vpack.c.b16 %v1006, %v1005
        %v1010 = vpack.c.b16 %v1008, %v1007
        %v1014 = vsel %vm432, %v989, 0
        %1016 = vmatprep.subr.bf16.mxu0 0
        %1017 = vmatpush1.bf16.msra.mxu0 0
        %1018 = vmatprep.subr.bf16.mxu0 0
        %1019 = vmatpush1.bf16.msra.mxu0 0
        %1020 = vmatprep.subr.bf16.mxu0 0
        %1021 = vmatpush1.bf16.msra.mxu0 0
        %1022 = vmatprep.subr.bf16.mxu0 0
        %1023 = vmatpush1.bf16.msra.mxu0 0
        %1024 = vmatprep.subr.bf16.mxu0 0
        %1025 = vmatpush1.bf16.msra.mxu0 0
        %1026 = vmatprep.subr.bf16.mxu0 0
        %1027 = vmatpush1.bf16.msra.mxu0 0
        %1028 = vmatprep.subr.bf16.mxu0 0
        %1029 = vmatpush1.bf16.msra.mxu0 %v1010
        %1030 = vmatprep.subr.bf16.mxu0 0
        %1031 = vmatpush1.bf16.msra.mxu0 %v1009
        %1032 = vmatprep.subr.bf16.mxu0 0
        %1033 = vmatpush2.bf16.msra.mxu0 0
        %1034 = vmatprep.subr.bf16.mxu0 0
        %1035 = vmatpush2.bf16.msra.mxu0 0
        %1036 = vmatprep.subr.bf16.mxu0 0
        %1037 = vmatpush2.bf16.msra.mxu0 0
        %1038 = vmatprep.subr.bf16.mxu0 0
        %1039 = vmatpush2.bf16.msra.mxu0 0
        %1040 = vmatprep.subr.bf16.mxu0 0
        %1041 = vmatpush2.bf16.msra.mxu0 0
        %1042 = vmatprep.subr.bf16.mxu0 0
        %1043 = vmatpush2.bf16.msra.mxu0 0
        %1044 = vmatprep.subr.bf16.mxu0 0
        %1045 = vmatpush2.bf16.msra.mxu0 0
        %1046 = vmatprep.subr.bf16.mxu0 0
        %1047 = vmatpush2.bf16.msra.mxu0 0
        %1048 = vmatprep.mubr.bf16.mxu0 0
        %1049 = vmatmul.mubr.bf16.gmra.mxu0 %v1014
        %v1050 = vpop.f32.mrf.mxu0
        %v1051 = vadd.f32 %v999, %v1050
        %v1052 = vpop.f32.mrf.mxu0
        %v1053 = vpop.f32.mrf.mxu0
        %v1054 = vpop.f32.mrf.mxu0
        %1055 = vdwg.mxu0
        %v1056 = vsel %vm432, %v1051, 0.0
        %1057 = vadd.xlane.f32.xlu0 %v1056
        %v1058 = vpop.xlane.xlu0 %1057
        %v1059 = vmul.f32 %v1058, %v436
        %v1060 = vsub.f32 %v1051, %v1059
        %v1061 = vmul.f32 %v1060, %v1060
        %v1062 = vsel %vm432, %v1061, 0.0
        %1063 = vadd.xlane.f32.xlu0 %v1062
        %v1064 = vpop.xlane.xlu0 %1063
        %v1065 = vmul.f32 %v1064, %v436
        %v1066 = vadd.f32 %v1065, 1e-05
        %v1067 = vrsqrt.pop %v1066
        %v1068 = vmul.f32 %v1060, %v1067
        %v1069 = vlaneseq
        %v1070 = vshrl.u32 %v1069, 7
        %v1071 = vsub.s32 2, %v1070
        %v1072 = vrot.slane %v431, %v1071
        %v1073 = vmul.f32 %v1068, %v1072
        %v1074 = vlaneseq
        %v1075 = vshrl.u32 %v1074, 7
        %v1076 = vsub.s32 3, %v1075
        %v1077 = vrot.slane %v431, %v1076
        %v1078 = vadd.f32 %v1073, %v1077
        %v1079 = vpack.c.bf16 %v1078, %v1078
        %v1080 = vld [vmem:[#allocation5] sm:$0xf]
        %v1081 = vld [vmem:[#allocation5 + $0x4] sm:$0xf]
        %v1082 = vld [vmem:[#allocation5 + $0x8] sm:$0xf]
        %v1083 = vld [vmem:[#allocation5 + $0xc] sm:$0xf]
        %v1084 = vld [vmem:[%s7] sm:$0x1]
        %v1086 = vlaneseq
        %v1087 = vshrl.u32 %v1086, 7
        %v1088 = vsub.s32 0, %v1087
        %v1089 = vrot.slane %v1084, %v1088
        %v1095 = vunpack.c.l.b16 %v1080
        %v1096 = vunpack.c.l.b16 %v1081
        %v1097 = vunpack.c.l.b16 %v1082
        %v1098 = vunpack.c.l.b16 %v1083
        %v1099 = vpack.c.b16 %v1096, %v1095
        %v1100 = vpack.c.b16 %v1098, %v1097
        %v1104 = vsel %vm432, %v1079, 0
        %1106 = vmatprep.subr.bf16.mxu0 0
        %1107 = vmatpush1.bf16.msra.mxu0 0
        %1108 = vmatprep.subr.bf16.mxu0 0
        %1109 = vmatpush1.bf16.msra.mxu0 0
        %1110 = vmatprep.subr.bf16.mxu0 0
        %1111 = vmatpush1.bf16.msra.mxu0 0
        %1112 = vmatprep.subr.bf16.mxu0 0
        %1113 = vmatpush1.bf16.msra.mxu0 0
        %1114 = vmatprep.subr.bf16.mxu0 0
        %1115 = vmatpush1.bf16.msra.mxu0 0
        %1116 = vmatprep.subr.bf16.mxu0 0
        %1117 = vmatpush1.bf16.msra.mxu0 0
        %1118 = vmatprep.subr.bf16.mxu0 0
        %1119 = vmatpush1.bf16.msra.mxu0 %v1100
        %1120 = vmatprep.subr.bf16.mxu0 0
        %1121 = vmatpush1.bf16.msra.mxu0 %v1099
        %1122 = vmatprep.subr.bf16.mxu0 0
        %1123 = vmatpush2.bf16.msra.mxu0 0
        %1124 = vmatprep.subr.bf16.mxu0 0
        %1125 = vmatpush2.bf16.msra.mxu0 0
        %1126 = vmatprep.subr.bf16.mxu0 0
        %1127 = vmatpush2.bf16.msra.mxu0 0
        %1128 = vmatprep.subr.bf16.mxu0 0
        %1129 = vmatpush2.bf16.msra.mxu0 0
        %1130 = vmatprep.subr.bf16.mxu0 0
        %1131 = vmatpush2.bf16.msra.mxu0 0
        %1132 = vmatprep.subr.bf16.mxu0 0
        %1133 = vmatpush2.bf16.msra.mxu0 0
        %1134 = vmatprep.subr.bf16.mxu0 0
        %1135 = vmatpush2.bf16.msra.mxu0 0
        %1136 = vmatprep.subr.bf16.mxu0 0
        %1137 = vmatpush2.bf16.msra.mxu0 0
        %1138 = vmatprep.mubr.bf16.mxu0 0
        %1139 = vmatmul.mubr.bf16.gmra.mxu0 %v1104
        %v1140 = vpop.f32.mrf.mxu0
        %v1141 = vadd.f32 %v1089, %v1140
        %v1142 = vpop.f32.mrf.mxu0
        %v1143 = vpop.f32.mrf.mxu0
        %v1144 = vpop.f32.mrf.mxu0
        %1145 = vdwg.mxu0
        %v1146 = vmax.f32 %v1141, 0.0
        %v1147 = vpack.c.bf16 %v1146, %v1146
        %v1148 = vld [vmem:[%s8] sm:$0xf]
        %v1149 = vld [vmem:[%s8 + $0x4] sm:$0xf]
        %v1150 = vld [vmem:[%s8 + $0x8] sm:$0xf]
        %v1151 = vld [vmem:[%s8 + $0xc] sm:$0xf]
        %v1152 = vld [vmem:[%s8 + $0x10] sm:$0xf]
        %v1153 = vld [vmem:[%s8 + $0x14] sm:$0xf]
        %v1154 = vld [vmem:[%s8 + $0x18] sm:$0xf]
        %v1155 = vld [vmem:[%s8 + $0x1c] sm:$0xf]
        %v1156 = vld [vmem:[%s9] sm:$0x1]
        %v1158 = vlaneseq
        %v1159 = vshrl.u32 %v1158, 7
        %v1160 = vsub.s32 0, %v1159
        %v1161 = vrot.slane %v1156, %v1160
        %v1171 = vunpack.c.l.b16 %v1148
        %v1172 = vunpack.c.l.b16 %v1149
        %v1173 = vunpack.c.l.b16 %v1150
        %v1174 = vunpack.c.l.b16 %v1151
        %v1175 = vunpack.c.l.b16 %v1152
        %v1176 = vunpack.c.l.b16 %v1153
        %v1177 = vunpack.c.l.b16 %v1154
        %v1178 = vunpack.c.l.b16 %v1155
        %v1179 = vpack.c.b16 %v1172, %v1171
        %v1180 = vpack.c.b16 %v1174, %v1173
        %v1181 = vpack.c.b16 %v1176, %v1175
        %v1182 = vpack.c.b16 %v1178, %v1177
        %vm1187 = vcmask 523264
        %v1189 = vsel %vm1187, %v1147, 0
        %1191 = vmatprep.subr.bf16.mxu0 0
        %1192 = vmatpush1.bf16.msra.mxu0 0
        %1193 = vmatprep.subr.bf16.mxu0 0
        %1194 = vmatpush1.bf16.msra.mxu0 0
        %1195 = vmatprep.subr.bf16.mxu0 0
        %1196 = vmatpush1.bf16.msra.mxu0 0
        %1197 = vmatprep.subr.bf16.mxu0 0
        %1198 = vmatpush1.bf16.msra.mxu0 0
        %1199 = vmatprep.subr.bf16.mxu0 0
        %1200 = vmatpush1.bf16.msra.mxu0 %v1182
        %1201 = vmatprep.subr.bf16.mxu0 0
        %1202 = vmatpush1.bf16.msra.mxu0 %v1181
        %1203 = vmatprep.subr.bf16.mxu0 0
        %1204 = vmatpush1.bf16.msra.mxu0 %v1180
        %1205 = vmatprep.subr.bf16.mxu0 0
        %1206 = vmatpush1.bf16.msra.mxu0 %v1179
        %1207 = vmatprep.subr.bf16.mxu0 0
        %1208 = vmatpush2.bf16.msra.mxu0 0
        %1209 = vmatprep.subr.bf16.mxu0 0
        %1210 = vmatpush2.bf16.msra.mxu0 0
        %1211 = vmatprep.subr.bf16.mxu0 0
        %1212 = vmatpush2.bf16.msra.mxu0 0
        %1213 = vmatprep.subr.bf16.mxu0 0
        %1214 = vmatpush2.bf16.msra.mxu0 0
        %1215 = vmatprep.subr.bf16.mxu0 0
        %1216 = vmatpush2.bf16.msra.mxu0 0
        %1217 = vmatprep.subr.bf16.mxu0 0
        %1218 = vmatpush2.bf16.msra.mxu0 0
        %1219 = vmatprep.subr.bf16.mxu0 0
        %1220 = vmatpush2.bf16.msra.mxu0 0
        %1221 = vmatprep.subr.bf16.mxu0 0
        %1222 = vmatpush2.bf16.msra.mxu0 0
        %1223 = vmatprep.mubr.bf16.mxu0 0
        %1224 = vmatmul.mubr.bf16.gmra.mxu0 %v1189
        %v1225 = vpop.f32.mrf.mxu0
        %v1226 = vadd.f32 %v1161, %v1225
        %v1227 = vpop.f32.mrf.mxu0
        %v1228 = vpop.f32.mrf.mxu0
        %v1229 = vpop.f32.mrf.mxu0
        %1230 = vdwg.mxu0
        %1231 = vst.msk [vmem:[%s420] sm:$0xff] %vm432, %v1226
        %s1232 = sand.u32 %s276, 1
        %s1233 = scalar_lea.sflag [#allocation4], %s1232
        %s1234 = sand.u32 %s276, 1
        %s1235 = smul.addr %s1234, 8
        %s1236 = scalar_lea.vmem [#allocation7], %s1235
        // Predicated region
        $region73: #{tpu_custom_call.1} parent=63 // pred_check
          %p1237 = pneg %p286
        $region74: #{tpu_custom_call.1} parent=63 // pred_check_branch
          %1239 = sbr.rel (%p1237) target = $region76
        $region75: #{tpu_custom_call.1} parent=63 // pred_region
          %s1241 = ssub.s32 128, 128
          %1242 = vsyncadd %s1233, %s1241
          %s1243 = smul.addr %s27, 128
          %s1244 = scalar_lea.hbm %s11, %s1243
          %s1246 = sshll.u32 %s1236, 4
          %s1247 = int_to_ptr.vmem [resolvable:$true] %s1246
          %1249 = dma.vmem_to_hbm [thread:$0]  %s1247, 128, %s1244, %s1233
        $region76: #{tpu_custom_call.1} parent=63 // pred_fallthru
          _
      $region64: #{tpu_custom_call.1} parent=5 // pred_fallthru
        _
      %p1250 = scmp.le.s32.totalorder 2, %s22
      // Predicated region
      $region77: #{tpu_custom_call.1} parent=5 // pred_check
        %p1251 = pneg %p1250
      $region78: #{tpu_custom_call.1} parent=5 // pred_check_branch
        %1253 = sbr.rel (%p1251) target = $region80
      $region79: #{tpu_custom_call.1} parent=5 // pred_region
        %s1254 = ssub.s32 %s22, 2
        // Predicated region
        $region81: #{tpu_custom_call.1} parent=79 // pred_check
          %p1255 = pneg %p292
        $region82: #{tpu_custom_call.1} parent=79 // pred_check_branch
          %1257 = sbr.rel (%p1255) target = $region84
        $region83: #{tpu_custom_call.1} parent=79 // pred_region
          %s1258 = sand.u32 %s277, 1
          %s1259 = scalar_lea.sflag [#allocation4], %s1258
          %s1260 = sand.u32 %s277, 1
          %s1261 = smul.addr %s1260, 8
          %s1262 = scalar_lea.vmem [#allocation7], %s1261
          %1263 = dma.done %s1259, 128
        $region84: #{tpu_custom_call.1} parent=79 // pred_fallthru
          _
      $region80: #{tpu_custom_call.1} parent=5 // pred_fallthru
        _
    $region6: #{tpu_custom_call.1} parent=1 // loop_footer
      %s26 = sadd.s32 1, %s22
    $region7: #{tpu_custom_call.1} parent=1 // loop_footer_branch
      %21 = sbr.rel target = $region3
    $region8: #{tpu_custom_call.1} parent=1 // loop_exit
      _
    %1264 = vsyncpa [#allocation3], 1
    %s1265 = scalar_lea.sflag [#allocation3], 1
    %1266 = vsyncpa %s1265, 1
    %1267 = vsyncpa [#allocation6], 1
    %1268 = vsyncpa [#allocation4], 1
    %s1269 = scalar_lea.sflag [#allocation4], 1
    %1270 = vsyncpa %s1269, 1

</llo_original>
